<compile_context>
chip_gen: v7x
topology: tpu7x:2x2x1
jax: 0.10.0
libtpu: 0.0.40
codegen_flags: <defaults>
</compile_context>

<pallas_src>
import functools
import math

import jax
import jax.numpy as jnp
from jax import lax
from jax.experimental import pallas as pl
from jax.experimental.pallas import tpu as pltpu


def _mha_kernel(x_ref, wqkv_ref, bqkv_ref, wo_ref, bo_ref, o_ref, *,
                num_heads, head_dim):
    """One batch element per grid step.

    x_ref:    (L, E)    rows of the current batch element, E on lanes
    wqkv_ref: (E, 3E)   fused [Wq*scale | Wk | Wv] (already transposed: y = x @ W)
    bqkv_ref: (1, 3E)   fused [bq*scale | bk | bv]
    wo_ref:   (E, E)    output projection (transposed)
    bo_ref:   (1, E)
    o_ref:    (L, E)
    """
    E = num_heads * head_dim
    Dh = head_dim

    x = x_ref[...]                                                   # (L, E) f32

    # Single fused QKV projection on the MXU (scale already folded into Q columns).
    qkv = jnp.dot(x, wqkv_ref[...],
                  preferred_element_type=jnp.float32) + bqkv_ref[...]   # (L, 3E)

    out_acc = None
    for h in range(num_heads):                                       # static unroll
        q_h = qkv[:, 0 * E + h * Dh: 0 * E + (h + 1) * Dh]           # (L, Dh), pre-scaled
        k_h = qkv[:, 1 * E + h * Dh: 1 * E + (h + 1) * Dh]           # (L, Dh)
        v_h = qkv[:, 2 * E + h * Dh: 2 * E + (h + 1) * Dh]           # (L, Dh)

        # scores = q_h @ k_h^T without materializing a transpose.
        s = lax.dot_general(q_h, k_h,
                            dimension_numbers=(((1,), (1,)), ((), ())),
                            preferred_element_type=jnp.float32)      # (L, L)

        m = jnp.max(s, axis=-1, keepdims=True)
        p = jnp.exp(s - m)                                           # unnormalized probs
        denom = jnp.sum(p, axis=-1, keepdims=True)                   # (L, 1)

        ctx_h = jnp.dot(p, v_h, preferred_element_type=jnp.float32)  # (L, Dh)
        # Deferred normalization: scale Dh context columns (not L prob columns)
        # with an EUP approximate reciprocal.
        ctx_h = ctx_h * pl.reciprocal(denom, approx=True)

        # Head h's contribution to the output projection: K-split accumulate,
        # avoids a lane-axis concatenate.
        part = jnp.dot(ctx_h, wo_ref[h * Dh:(h + 1) * Dh, :],
                       preferred_element_type=jnp.float32)           # (L, E)
        out_acc = part if out_acc is None else out_acc + part

    out = out_acc + bo_ref[...]
    o_ref[...] = out.astype(o_ref.dtype)


def transformer_attention(x, params, num_heads):
    """x: (B, E, L) float32 (PyTorch layout). Returns (B, E, L)."""
    B, E, L = x.shape
    assert E % num_heads == 0
    head_dim = E // num_heads
    scale = 1.0 / math.sqrt(head_dim)

    # in_proj_weight is (3E, E) (torch: y = x @ W.T + b). Pre-transpose so the
    # kernel computes y = x @ W, fuse Q/K/V along columns, and fold the softmax
    # scale into the Q columns.
    w = params["in_proj_weight"]
    b = params["in_proj_bias"]
    wq = w[0 * E:1 * E].T * scale                                    # (E, E)
    wk = w[1 * E:2 * E].T
    wv = w[2 * E:3 * E].T
    bq = b[0 * E:1 * E] * scale
    bk = b[1 * E:2 * E]
    bv = b[2 * E:3 * E]
    wqkv = jnp.concatenate([wq, wk, wv], axis=1)                     # (E, 3E)
    bqkv = jnp.concatenate([bq, bk, bv]).reshape(1, 3 * E)           # (1, 3E)
    wo = params["out_proj_weight"].T                                 # (E, E)
    bo = params["out_proj_bias"].reshape(1, E)                       # (1, E)

    # (B, E, L) -> (B, L, E) -> (B*L, E): lane-dense 2-D slab, one batch element
    # (L rows) per grid step.
    x2d = jnp.transpose(x, (0, 2, 1)).reshape(B * L, E)

    kernel = functools.partial(_mha_kernel, num_heads=num_heads, head_dim=head_dim)
    const2d = lambda shape: pl.BlockSpec(shape, lambda bidx: (0, 0))  # fetched once

    out2d = pl.pallas_call(
        kernel,
        out_shape=jax.ShapeDtypeStruct((B * L, E), x.dtype),
        grid=(B,),
        in_specs=[
            pl.BlockSpec((L, E), lambda bidx: (bidx, 0)),            # x rows of batch b
            const2d((E, 3 * E)),                                     # fused QKV weight
            const2d((1, 3 * E)),                                     # fused QKV bias
            const2d((E, E)),                                         # Wo
            const2d((1, E)),                                         # bo
        ],
        out_specs=pl.BlockSpec((L, E), lambda bidx: (bidx, 0)),
        compiler_params=pltpu.CompilerParams(
            dimension_semantics=("parallel",)),                      # v7x: 2 TCs share grid
    )(x2d, wqkv, bqkv, wo, bo)

    return jnp.transpose(out2d.reshape(B, L, E), (0, 2, 1))          # (B, E, L)


def _reference_mha(x, params, num_heads):
    """Pure-JAX reference of torch.nn.MultiheadAttention self-attention forward."""
    B, E, L = x.shape
    head_dim = E // num_heads
    xs = jnp.transpose(x, (0, 2, 1))                                 # (B, L, E)
    wq = params["in_proj_weight"][0 * E:1 * E]
    wk = params["in_proj_weight"][1 * E:2 * E]
    wv = params["in_proj_weight"][2 * E:3 * E]
    bq = params["in_proj_bias"][0 * E:1 * E]
    bk = params["in_proj_bias"][1 * E:2 * E]
    bv = params["in_proj_bias"][2 * E:3 * E]
    q = xs @ wq.T + bq
    k = xs @ wk.T + bk
    v = xs @ wv.T + bv

    def split(t):
        return t.reshape(B, L, num_heads, head_dim).transpose(0, 2, 1, 3)

    qh, kh, vh = split(q), split(k), split(v)                        # (B, H, L, Dh)
    s = jnp.einsum("bhqd,bhkd->bhqk", qh, kh) / math.sqrt(head_dim)
    p = jax.nn.softmax(s, axis=-1)
    ctx = jnp.einsum("bhqk,bhkd->bhqd", p, vh)                       # (B, H, L, Dh)
    ctx = ctx.transpose(0, 2, 1, 3).reshape(B, L, E)
    out = ctx @ params["out_proj_weight"].T + params["out_proj_bias"]
    return jnp.transpose(out, (0, 2, 1))                             # (B, E, L)


if __name__ == "__main__":
    B, E, L, H = 2, 32, 8, 4   # batch, input_size (embed dim), seq_len, num_heads

    key = jax.random.PRNGKey(0)
    k_x, k_w, k_b, k_ow, k_ob = jax.random.split(key, 5)

    x = jax.random.normal(k_x, (B, E, L), dtype=jnp.float32)

    # Deterministic synthetic parameters (shapes match nn.MultiheadAttention(E, H)).
    params = {
        "in_proj_weight": 0.1 * jax.random.normal(k_w, (3 * E, E), dtype=jnp.float32),
        "in_proj_bias":   0.1 * jax.random.normal(k_b, (3 * E,), dtype=jnp.float32),
        "out_proj_weight": 0.1 * jax.random.normal(k_ow, (E, E), dtype=jnp.float32),
        "out_proj_bias":  0.1 * jax.random.normal(k_ob, (E,), dtype=jnp.float32),
    }

    out = transformer_attention(x, params, H)
    out = jax.block_until_ready(out)

    ref = _reference_mha(x, params, H)
    assert out.shape == (B, E, L)
    # Tolerance slightly loosened vs pure-f32 because softmax normalization uses the
    # EUP approximate reciprocal (pl.reciprocal(approx=True)).
    assert jnp.allclose(out, ref, rtol=2e-3, atol=2e-3), "mismatch vs reference"

    print("KERNEL_OK")
</pallas_src>

<mosaic_0001>
module attributes {stable_mosaic.version = 11 : i64} {
  func.func @_mha_kernel(%arg0: i32, %arg1: memref<8x32xf32, #tpu.memory_space<vmem>>, %arg2: memref<32x96xf32, #tpu.memory_space<vmem>>, %arg3: memref<1x96xf32, #tpu.memory_space<vmem>>, %arg4: memref<32x32xf32, #tpu.memory_space<vmem>>, %arg5: memref<1x32xf32, #tpu.memory_space<vmem>>, %arg6: memref<8x32xf32, #tpu.memory_space<vmem>>) attributes {dimension_semantics = [#tpu.dimension_semantics<parallel>], iteration_bounds = array<i64: 2>, scalar_prefetch = 0 : i64, scratch_operands = 0 : i64, tpu.core_type = #tpu.core_type<tc>, window_params = [{transform_indices = @transform_0, window_bounds = array<i64: 8, 32>}, {pipeline_mode = #tpu.pipeline_mode<synchronous>, transform_indices = @transform_1, window_bounds = array<i64: 32, 96>}, {pipeline_mode = #tpu.pipeline_mode<synchronous>, transform_indices = @transform_2, window_bounds = array<i64: 1, 96>}, {pipeline_mode = #tpu.pipeline_mode<synchronous>, transform_indices = @transform_3, window_bounds = array<i64: 32, 32>}, {pipeline_mode = #tpu.pipeline_mode<synchronous>, transform_indices = @transform_4, window_bounds = array<i64: 1, 32>}, {transform_indices = @transform_5, window_bounds = array<i64: 8, 32>}]} {
    %c0 = arith.constant 0 : index
    %c0_0 = arith.constant 0 : index
    %0 = vector.load %arg1[%c0, %c0_0] : memref<8x32xf32, #tpu.memory_space<vmem>>, vector<8x32xf32>
    %c0_1 = arith.constant 0 : index
    %c0_2 = arith.constant 0 : index
    %1 = vector.load %arg2[%c0_1, %c0_2] : memref<32x96xf32, #tpu.memory_space<vmem>>, vector<32x96xf32>
    %cst = arith.constant dense<0.000000e+00> : vector<8x96xf32>
    %2 = tpu.matmul %0, %1, %cst {dimension_numbers = #tpu.dot_dimension_numbers<[1], [0], [0], [1], [0, 0, 1, 1], [], []>} : vector<8x32xf32>, vector<32x96xf32>, vector<8x96xf32> -> vector<8x96xf32>
    %c0_3 = arith.constant 0 : index
    %c0_4 = arith.constant 0 : index
    %3 = vector.load %arg3[%c0_3, %c0_4] : memref<1x96xf32, #tpu.memory_space<vmem>>, vector<1x96xf32>
    %4 = vector.broadcast %3 : vector<1x96xf32> to vector<8x96xf32>
    %5 = arith.addf %2, %4 : vector<8x96xf32>
    %6 = vector.extract_strided_slice %5 {offsets = [0, 0], sizes = [8, 8], strides = [1, 1]} : vector<8x96xf32> to vector<8x8xf32>
    %7 = vector.extract_strided_slice %5 {offsets = [0, 32], sizes = [8, 8], strides = [1, 1]} : vector<8x96xf32> to vector<8x8xf32>
    %8 = vector.extract_strided_slice %5 {offsets = [0, 64], sizes = [8, 8], strides = [1, 1]} : vector<8x96xf32> to vector<8x8xf32>
    %cst_5 = arith.constant dense<0.000000e+00> : vector<8x8xf32>
    %9 = tpu.matmul %6, %7, %cst_5 {dimension_numbers = #tpu.dot_dimension_numbers<[1], [1], [0], [0], [0, 0, 1, 0], [], []>} : vector<8x8xf32>, vector<8x8xf32>, vector<8x8xf32> -> vector<8x8xf32>
    %cst_6 = arith.constant dense<0xFF800000> : vector<8xf32>
    %10 = vector.multi_reduction <maximumf>, %9, %cst_6 [1] : vector<8x8xf32> to vector<8xf32>
    %11 = vector.shape_cast %10 : vector<8xf32> to vector<8x1xf32>
    %12 = vector.broadcast %11 : vector<8x1xf32> to vector<8x8xf32>
    %13 = arith.subf %9, %12 : vector<8x8xf32>
    %14 = math.exp %13 : vector<8x8xf32>
    %cst_7 = arith.constant dense<0.000000e+00> : vector<8xf32>
    %15 = vector.multi_reduction <add>, %14, %cst_7 [1] : vector<8x8xf32> to vector<8xf32>
    %16 = vector.shape_cast %15 : vector<8xf32> to vector<8x1xf32>
    %cst_8 = arith.constant dense<0.000000e+00> : vector<8x8xf32>
    %17 = tpu.matmul %14, %8, %cst_8 {dimension_numbers = #tpu.dot_dimension_numbers<[1], [0], [0], [1], [0, 0, 1, 1], [], []>} : vector<8x8xf32>, vector<8x8xf32>, vector<8x8xf32> -> vector<8x8xf32>
    %18 = tpu.reciprocal %16 {approx = true} : vector<8x1xf32> -> vector<8x1xf32>
    %19 = vector.broadcast %18 : vector<8x1xf32> to vector<8x8xf32>
    %20 = arith.mulf %17, %19 : vector<8x8xf32>
    %c0_9 = arith.constant 0 : index
    %c0_10 = arith.constant 0 : index
    %21 = vector.load %arg4[%c0_9, %c0_10] : memref<32x32xf32, #tpu.memory_space<vmem>>, vector<8x32xf32>
    %cst_11 = arith.constant dense<0.000000e+00> : vector<8x32xf32>
    %22 = tpu.matmul %20, %21, %cst_11 {dimension_numbers = #tpu.dot_dimension_numbers<[1], [0], [0], [1], [0, 0, 1, 1], [], []>} : vector<8x8xf32>, vector<8x32xf32>, vector<8x32xf32> -> vector<8x32xf32>
    %23 = vector.extract_strided_slice %5 {offsets = [0, 8], sizes = [8, 8], strides = [1, 1]} : vector<8x96xf32> to vector<8x8xf32>
    %24 = vector.extract_strided_slice %5 {offsets = [0, 40], sizes = [8, 8], strides = [1, 1]} : vector<8x96xf32> to vector<8x8xf32>
    %25 = vector.extract_strided_slice %5 {offsets = [0, 72], sizes = [8, 8], strides = [1, 1]} : vector<8x96xf32> to vector<8x8xf32>
    %cst_12 = arith.constant dense<0.000000e+00> : vector<8x8xf32>
    %26 = tpu.matmul %23, %24, %cst_12 {dimension_numbers = #tpu.dot_dimension_numbers<[1], [1], [0], [0], [0, 0, 1, 0], [], []>} : vector<8x8xf32>, vector<8x8xf32>, vector<8x8xf32> -> vector<8x8xf32>
    %cst_13 = arith.constant dense<0xFF800000> : vector<8xf32>
    %27 = vector.multi_reduction <maximumf>, %26, %cst_13 [1] : vector<8x8xf32> to vector<8xf32>
    %28 = vector.shape_cast %27 : vector<8xf32> to vector<8x1xf32>
    %29 = vector.broadcast %28 : vector<8x1xf32> to vector<8x8xf32>
    %30 = arith.subf %26, %29 : vector<8x8xf32>
    %31 = math.exp %30 : vector<8x8xf32>
    %cst_14 = arith.constant dense<0.000000e+00> : vector<8xf32>
    %32 = vector.multi_reduction <add>, %31, %cst_14 [1] : vector<8x8xf32> to vector<8xf32>
    %33 = vector.shape_cast %32 : vector<8xf32> to vector<8x1xf32>
    %cst_15 = arith.constant dense<0.000000e+00> : vector<8x8xf32>
    %34 = tpu.matmul %31, %25, %cst_15 {dimension_numbers = #tpu.dot_dimension_numbers<[1], [0], [0], [1], [0, 0, 1, 1], [], []>} : vector<8x8xf32>, vector<8x8xf32>, vector<8x8xf32> -> vector<8x8xf32>
    %35 = tpu.reciprocal %33 {approx = true} : vector<8x1xf32> -> vector<8x1xf32>
    %36 = vector.broadcast %35 : vector<8x1xf32> to vector<8x8xf32>
    %37 = arith.mulf %34, %36 : vector<8x8xf32>
    %c8 = arith.constant 8 : index
    %c0_16 = arith.constant 0 : index
    %38 = vector.load %arg4[%c8, %c0_16] : memref<32x32xf32, #tpu.memory_space<vmem>>, vector<8x32xf32>
    %cst_17 = arith.constant dense<0.000000e+00> : vector<8x32xf32>
    %39 = tpu.matmul %37, %38, %cst_17 {dimension_numbers = #tpu.dot_dimension_numbers<[1], [0], [0], [1], [0, 0, 1, 1], [], []>} : vector<8x8xf32>, vector<8x32xf32>, vector<8x32xf32> -> vector<8x32xf32>
    %40 = arith.addf %22, %39 : vector<8x32xf32>
    %41 = vector.extract_strided_slice %5 {offsets = [0, 16], sizes = [8, 8], strides = [1, 1]} : vector<8x96xf32> to vector<8x8xf32>
    %42 = vector.extract_strided_slice %5 {offsets = [0, 48], sizes = [8, 8], strides = [1, 1]} : vector<8x96xf32> to vector<8x8xf32>
    %43 = vector.extract_strided_slice %5 {offsets = [0, 80], sizes = [8, 8], strides = [1, 1]} : vector<8x96xf32> to vector<8x8xf32>
    %cst_18 = arith.constant dense<0.000000e+00> : vector<8x8xf32>
    %44 = tpu.matmul %41, %42, %cst_18 {dimension_numbers = #tpu.dot_dimension_numbers<[1], [1], [0], [0], [0, 0, 1, 0], [], []>} : vector<8x8xf32>, vector<8x8xf32>, vector<8x8xf32> -> vector<8x8xf32>
    %cst_19 = arith.constant dense<0xFF800000> : vector<8xf32>
    %45 = vector.multi_reduction <maximumf>, %44, %cst_19 [1] : vector<8x8xf32> to vector<8xf32>
    %46 = vector.shape_cast %45 : vector<8xf32> to vector<8x1xf32>
    %47 = vector.broadcast %46 : vector<8x1xf32> to vector<8x8xf32>
    %48 = arith.subf %44, %47 : vector<8x8xf32>
    %49 = math.exp %48 : vector<8x8xf32>
    %cst_20 = arith.constant dense<0.000000e+00> : vector<8xf32>
    %50 = vector.multi_reduction <add>, %49, %cst_20 [1] : vector<8x8xf32> to vector<8xf32>
    %51 = vector.shape_cast %50 : vector<8xf32> to vector<8x1xf32>
    %cst_21 = arith.constant dense<0.000000e+00> : vector<8x8xf32>
    %52 = tpu.matmul %49, %43, %cst_21 {dimension_numbers = #tpu.dot_dimension_numbers<[1], [0], [0], [1], [0, 0, 1, 1], [], []>} : vector<8x8xf32>, vector<8x8xf32>, vector<8x8xf32> -> vector<8x8xf32>
    %53 = tpu.reciprocal %51 {approx = true} : vector<8x1xf32> -> vector<8x1xf32>
    %54 = vector.broadcast %53 : vector<8x1xf32> to vector<8x8xf32>
    %55 = arith.mulf %52, %54 : vector<8x8xf32>
    %c16 = arith.constant 16 : index
    %c0_22 = arith.constant 0 : index
    %56 = vector.load %arg4[%c16, %c0_22] : memref<32x32xf32, #tpu.memory_space<vmem>>, vector<8x32xf32>
    %cst_23 = arith.constant dense<0.000000e+00> : vector<8x32xf32>
    %57 = tpu.matmul %55, %56, %cst_23 {dimension_numbers = #tpu.dot_dimension_numbers<[1], [0], [0], [1], [0, 0, 1, 1], [], []>} : vector<8x8xf32>, vector<8x32xf32>, vector<8x32xf32> -> vector<8x32xf32>
    %58 = arith.addf %40, %57 : vector<8x32xf32>
    %59 = vector.extract_strided_slice %5 {offsets = [0, 24], sizes = [8, 8], strides = [1, 1]} : vector<8x96xf32> to vector<8x8xf32>
    %60 = vector.extract_strided_slice %5 {offsets = [0, 56], sizes = [8, 8], strides = [1, 1]} : vector<8x96xf32> to vector<8x8xf32>
    %61 = vector.extract_strided_slice %5 {offsets = [0, 88], sizes = [8, 8], strides = [1, 1]} : vector<8x96xf32> to vector<8x8xf32>
    %cst_24 = arith.constant dense<0.000000e+00> : vector<8x8xf32>
    %62 = tpu.matmul %59, %60, %cst_24 {dimension_numbers = #tpu.dot_dimension_numbers<[1], [1], [0], [0], [0, 0, 1, 0], [], []>} : vector<8x8xf32>, vector<8x8xf32>, vector<8x8xf32> -> vector<8x8xf32>
    %cst_25 = arith.constant dense<0xFF800000> : vector<8xf32>
    %63 = vector.multi_reduction <maximumf>, %62, %cst_25 [1] : vector<8x8xf32> to vector<8xf32>
    %64 = vector.shape_cast %63 : vector<8xf32> to vector<8x1xf32>
    %65 = vector.broadcast %64 : vector<8x1xf32> to vector<8x8xf32>
    %66 = arith.subf %62, %65 : vector<8x8xf32>
    %67 = math.exp %66 : vector<8x8xf32>
    %cst_26 = arith.constant dense<0.000000e+00> : vector<8xf32>
    %68 = vector.multi_reduction <add>, %67, %cst_26 [1] : vector<8x8xf32> to vector<8xf32>
    %69 = vector.shape_cast %68 : vector<8xf32> to vector<8x1xf32>
    %cst_27 = arith.constant dense<0.000000e+00> : vector<8x8xf32>
    %70 = tpu.matmul %67, %61, %cst_27 {dimension_numbers = #tpu.dot_dimension_numbers<[1], [0], [0], [1], [0, 0, 1, 1], [], []>} : vector<8x8xf32>, vector<8x8xf32>, vector<8x8xf32> -> vector<8x8xf32>
    %71 = tpu.reciprocal %69 {approx = true} : vector<8x1xf32> -> vector<8x1xf32>
    %72 = vector.broadcast %71 : vector<8x1xf32> to vector<8x8xf32>
    %73 = arith.mulf %70, %72 : vector<8x8xf32>
    %c24 = arith.constant 24 : index
    %c0_28 = arith.constant 0 : index
    %74 = vector.load %arg4[%c24, %c0_28] : memref<32x32xf32, #tpu.memory_space<vmem>>, vector<8x32xf32>
    %cst_29 = arith.constant dense<0.000000e+00> : vector<8x32xf32>
    %75 = tpu.matmul %73, %74, %cst_29 {dimension_numbers = #tpu.dot_dimension_numbers<[1], [0], [0], [1], [0, 0, 1, 1], [], []>} : vector<8x8xf32>, vector<8x32xf32>, vector<8x32xf32> -> vector<8x32xf32>
    %76 = arith.addf %58, %75 : vector<8x32xf32>
    %c0_30 = arith.constant 0 : index
    %c0_31 = arith.constant 0 : index
    %77 = vector.load %arg5[%c0_30, %c0_31] : memref<1x32xf32, #tpu.memory_space<vmem>>, vector<1x32xf32>
    %78 = vector.broadcast %77 : vector<1x32xf32> to vector<8x32xf32>
    %79 = arith.addf %76, %78 : vector<8x32xf32>
    %c0_32 = arith.constant 0 : index
    %c0_33 = arith.constant 0 : index
    %80 = vector.load %arg6[%c0_32, %c0_33] : memref<8x32xf32, #tpu.memory_space<vmem>>, vector<8x32xf32>
    tpu.vector_store %arg6[%c0_32, %c0_33], %79 {strides = array<i32>} : memref<8x32xf32, #tpu.memory_space<vmem>>, vector<8x32xf32>,
    return
  }
  func.func @transform_0(%arg0: i32) -> (i32, i32) {
    %c0_i32 = arith.constant 0 : i32
    %c0_i32_0 = arith.constant 0 : i32
    return %arg0, %c0_i32 : i32, i32
  }
  func.func @transform_1(%arg0: i32) -> (i32, i32) {
    %c0_i32 = arith.constant 0 : i32
    %c0_i32_0 = arith.constant 0 : i32
    %c0_i32_1 = arith.constant 0 : i32
    return %c0_i32, %c0_i32_0 : i32, i32
  }
  func.func @transform_2(%arg0: i32) -> (i32, i32) {
    %c0_i32 = arith.constant 0 : i32
    %c0_i32_0 = arith.constant 0 : i32
    %c0_i32_1 = arith.constant 0 : i32
    return %c0_i32, %c0_i32_0 : i32, i32
  }
  func.func @transform_3(%arg0: i32) -> (i32, i32) {
    %c0_i32 = arith.constant 0 : i32
    %c0_i32_0 = arith.constant 0 : i32
    %c0_i32_1 = arith.constant 0 : i32
    return %c0_i32, %c0_i32_0 : i32, i32
  }
  func.func @transform_4(%arg0: i32) -> (i32, i32) {
    %c0_i32 = arith.constant 0 : i32
    %c0_i32_0 = arith.constant 0 : i32
    %c0_i32_1 = arith.constant 0 : i32
    return %c0_i32, %c0_i32_0 : i32, i32
  }
  func.func @transform_5(%arg0: i32) -> (i32, i32) {
    %c0_i32 = arith.constant 0 : i32
    %c0_i32_0 = arith.constant 0 : i32
    return %arg0, %c0_i32 : i32, i32
  }
}

</mosaic_0001>

<llo_original>
// kernel: tpu_custom_call.1
$region0: #{tpu_custom_call.1}
  #allocation0 [shape = 'u32[]', space=smem, size = 0x4, offset = 0x4, fixed_abs, tag = 'smem constant byte address 0x4 - core index']
  #allocation1 [shape = 'u32[144,128]{1,0:T(1,128)}', space=vmem, size = 0x12000, scoped, tag = 'internal scratch']
  %s0 = inlined_call_operand.hbm [shape: f32[16,32], index: 0, kind: input, shape index: {}]
  %s1 = inlined_call_operand.hbm [shape: f32[32,96], index: 1, kind: input, shape index: {}]
  %s2 = inlined_call_operand.vmem [shape: f32[1,96], index: 2, kind: input, shape index: {}]
  %s3 = inlined_call_operand.hbm [shape: f32[32,32], index: 3, kind: input, shape index: {}]
  %s4 = inlined_call_operand.vmem [shape: f32[1,32], index: 4, kind: input, shape index: {}]
  %s5 = inlined_call_operand.hbm [shape: f32[16,32], index: 5, kind: output, shape index: {}]
  %s6 = sld [smem:[#allocation0]]
  $region65: #{tpu_custom_call.1} parent=0
    _
  %s8 = ssub.s32 1, %s6
  %s9 = scalar_select 0, %s8, %s6
  $region1: #{tpu_custom_call.1} parent=0
    #allocation2 [shape = 'u8[8192]{0}', space=vmem, size = 0x2000, scoped, tag = 'input window, operand 0']
    #allocation3 [shape = 's32[2]{0}', space=sflag, size = 0x8, scoped, tag = 'scoped memory for tpu_custom_call.1']
    #allocation4 [shape = 's32[2]{0}', space=sflag, size = 0x8, scoped, tag = 'scoped memory for tpu_custom_call.1']
    #allocation5 [shape = 'u8[16384]{0}', space=vmem, size = 0x4000, scoped, tag = 'input window, operand 1, single buffered']
    #allocation6 [shape = 's32[1]{0}', space=sflag, size = 0x4, scoped, tag = 'scoped memory for tpu_custom_call.1']
    #allocation7 [shape = 'u8[16384]{0}', space=vmem, size = 0x4000, scoped, tag = 'input window, operand 3, single buffered']
    #allocation8 [shape = 'u8[8192]{0}', space=vmem, size = 0x2000, scoped, tag = 'output window, operand 0']
    %10 = vsyncpa [#allocation3], 0
    %s11 = scalar_lea.sflag [#allocation3], 1
    %12 = vsyncpa %s11, 0
    %13 = vsyncpa [#allocation6], 0
    %14 = vsyncpa [#allocation4], 0
    %s15 = scalar_lea.sflag [#allocation4], 1
    %16 = vsyncpa %s15, 0
    loop: start=0, step=1, limit=4
    $region2: #{tpu_custom_call.1} parent=1 // loop_pre_header
      _
    $region3: #{tpu_custom_call.1} parent=1 // loop_header
      %s18 = sphi 0, %s22
      %p19 = scmp.ge.s32.totalorder %s18, 4
      %s28 = sphi 0, %s30
      %s31 = sphi 0, %s28
      %s32 = sphi 0, %s31
      %s48 = sphi 0, %s32
      %s52 = sphi 0, %s52
      %s54 = sphi 0, %s52
      %s55 = sphi 0, %s54
      %s69 = sphi 0, %s55
      %s73 = sphi 0, %s73
      %s75 = sphi 0, %s73
      %s76 = sphi 0, %s75
      %s90 = sphi 0, %s76
      %s94 = sphi 0, %s94
      %s96 = sphi 0, %s94
      %s97 = sphi 0, %s96
      %s111 = sphi 0, %s97
      %s115 = sphi 0, %s115
      %s117 = sphi 0, %s115
      %s118 = sphi 0, %s117
      %s132 = sphi 0, %s118
      %s138 = sphi 0, %s140
      %s141 = sphi 0, %s138
      %s142 = sphi 0, %s141
      %s158 = sphi 0, %s142
    $region4: #{tpu_custom_call.1} parent=1 // loop_header_branch
      %21 = sbr.rel (%p19) target = $region8
    $region5: #{tpu_custom_call.1} parent=1 // loop_body
      %s23 = ssub.s32 %s18, 1
      %s24 = ssub.s32 %s18, 2
      %s25 = sadd.s32 %s18, 1
      %s26 = ssub.s32 %s18, %s25
      %p27 = scmp.eq.s32.totalorder %s26, 0
      %s29 = sadd.s32 %s28, 1
      %s30 = scalar_select %p27, %s28, %s29
      %p33 = pneg %p27
      %p34 = scmp.eq.s32.totalorder %s18, 1
      %p35 = por %p33, %p34
      %p36 = scmp.ne.s32.totalorder %s28, %s31
      %p37 = scmp.eq.s32.totalorder %s18, 0
      %p38 = por %p36, %p37
      %p39 = scmp.ne.s32.totalorder %s28, %s31
      %p40 = scmp.eq.s32.totalorder %s23, 1
      %p41 = por %p39, %p40
      %p42 = scmp.ne.s32.totalorder %s31, %s32
      %p43 = scmp.eq.s32.totalorder %s23, 0
      %p44 = por %p42, %p43
      %p45 = scmp.ne.s32.totalorder %s31, %s32
      %p46 = scmp.eq.s32.totalorder %s24, 1
      %p47 = por %p45, %p46
      %p49 = scmp.ne.s32.totalorder %s32, %s48
      %p50 = scmp.eq.s32.totalorder %s24, 0
      %p51 = por %p49, %p50
      %s53 = sadd.s32 %s52, 1
      %p56 = scmp.eq.s32.totalorder %s18, 1
      %p57 = scmp.ne.s32.totalorder %s52, %s54
      %p58 = scmp.eq.s32.totalorder %s18, 0
      %p59 = por %p57, %p58
      %p60 = scmp.ne.s32.totalorder %s52, %s54
      %p61 = scmp.eq.s32.totalorder %s23, 1
      %p62 = por %p60, %p61
      %p63 = scmp.ne.s32.totalorder %s54, %s55
      %p64 = scmp.eq.s32.totalorder %s23, 0
      %p65 = por %p63, %p64
      %p66 = scmp.ne.s32.totalorder %s54, %s55
      %p67 = scmp.eq.s32.totalorder %s24, 1
      %p68 = por %p66, %p67
      %p70 = scmp.ne.s32.totalorder %s55, %s69
      %p71 = scmp.eq.s32.totalorder %s24, 0
      %p72 = por %p70, %p71
      %s74 = sadd.s32 %s73, 1
      %p77 = scmp.eq.s32.totalorder %s18, 1
      %p78 = scmp.ne.s32.totalorder %s73, %s75
      %p79 = scmp.eq.s32.totalorder %s18, 0
      %p80 = por %p78, %p79
      %p81 = scmp.ne.s32.totalorder %s73, %s75
      %p82 = scmp.eq.s32.totalorder %s23, 1
      %p83 = por %p81, %p82
      %p84 = scmp.ne.s32.totalorder %s75, %s76
      %p85 = scmp.eq.s32.totalorder %s23, 0
      %p86 = por %p84, %p85
      %p87 = scmp.ne.s32.totalorder %s75, %s76
      %p88 = scmp.eq.s32.totalorder %s24, 1
      %p89 = por %p87, %p88
      %p91 = scmp.ne.s32.totalorder %s76, %s90
      %p92 = scmp.eq.s32.totalorder %s24, 0
      %p93 = por %p91, %p92
      %s95 = sadd.s32 %s94, 1
      %p98 = scmp.eq.s32.totalorder %s18, 1
      %p99 = scmp.ne.s32.totalorder %s94, %s96
      %p100 = scmp.eq.s32.totalorder %s18, 0
      %p101 = por %p99, %p100
      %p102 = scmp.ne.s32.totalorder %s94, %s96
      %p103 = scmp.eq.s32.totalorder %s23, 1
      %p104 = por %p102, %p103
      %p105 = scmp.ne.s32.totalorder %s96, %s97
      %p106 = scmp.eq.s32.totalorder %s23, 0
      %p107 = por %p105, %p106
      %p108 = scmp.ne.s32.totalorder %s96, %s97
      %p109 = scmp.eq.s32.totalorder %s24, 1
      %p110 = por %p108, %p109
      %p112 = scmp.ne.s32.totalorder %s97, %s111
      %p113 = scmp.eq.s32.totalorder %s24, 0
      %p114 = por %p112, %p113
      %s116 = sadd.s32 %s115, 1
      %p119 = scmp.eq.s32.totalorder %s18, 1
      %p120 = scmp.ne.s32.totalorder %s115, %s117
      %p121 = scmp.eq.s32.totalorder %s18, 0
      %p122 = por %p120, %p121
      %p123 = scmp.ne.s32.totalorder %s115, %s117
      %p124 = scmp.eq.s32.totalorder %s23, 1
      %p125 = por %p123, %p124
      %p126 = scmp.ne.s32.totalorder %s117, %s118
      %p127 = scmp.eq.s32.totalorder %s23, 0
      %p128 = por %p126, %p127
      %p129 = scmp.ne.s32.totalorder %s117, %s118
      %p130 = scmp.eq.s32.totalorder %s24, 1
      %p131 = por %p129, %p130
      %p133 = scmp.ne.s32.totalorder %s118, %s132
      %p134 = scmp.eq.s32.totalorder %s24, 0
      %p135 = por %p133, %p134
      %s136 = ssub.s32 %s18, %s25
      %p137 = scmp.eq.s32.totalorder %s136, 0
      %s139 = sadd.s32 %s138, 1
      %s140 = scalar_select %p137, %s138, %s139
      %p143 = pneg %p137
      %p144 = scmp.eq.s32.totalorder %s18, 1
      %p145 = por %p143, %p144
      %p146 = scmp.ne.s32.totalorder %s138, %s141
      %p147 = scmp.eq.s32.totalorder %s18, 0
      %p148 = por %p146, %p147
      %p149 = scmp.ne.s32.totalorder %s138, %s141
      %p150 = scmp.eq.s32.totalorder %s23, 1
      %p151 = por %p149, %p150
      %p152 = scmp.ne.s32.totalorder %s141, %s142
      %p153 = scmp.eq.s32.totalorder %s23, 0
      %p154 = por %p152, %p153
      %p155 = scmp.ne.s32.totalorder %s141, %s142
      %p156 = scmp.eq.s32.totalorder %s24, 1
      %p157 = por %p155, %p156
      %p159 = scmp.ne.s32.totalorder %s142, %s158
      %p160 = scmp.eq.s32.totalorder %s24, 0
      %p161 = por %p159, %p160
      %p162 = scmp.le.s32.totalorder 1, %s18
      %p163 = scmp.lt.s32.totalorder %s18, 3
      %p164 = pnand %p162, %p163
      %p165 = pneg %p164
      // Predicated region
      $region9: #{tpu_custom_call.1} parent=5 // pred_check
        _
      $region10: #{tpu_custom_call.1} parent=5 // pred_check_branch
        %167 = sbr.rel (%p164) target = $region12
      $region11: #{tpu_custom_call.1} parent=5 // pred_region
        %s168 = ssub.s32 %s18, 1
        // Predicated region
        $region13: #{tpu_custom_call.1} parent=11 // pred_check
          %p169 = pneg %p65
        $region14: #{tpu_custom_call.1} parent=11 // pred_check_branch
          %171 = sbr.rel (%p169) target = $region16
        $region15: #{tpu_custom_call.1} parent=11 // pred_region
          %s173 = ssub.s32 512, 512
          %174 = vsyncadd [#allocation6], %s173
          %s175 = sshll.u32 [#allocation5], 4
          %s176 = int_to_ptr.vmem [resolvable:$true] %s175
          %181 = dma.hbm_to_vmem [thread:$0]  %s1, 512, %s176, [#allocation6], 128, 128, 8
        $region16: #{tpu_custom_call.1} parent=11 // pred_fallthru
          _
        // Predicated region
        $region17: #{tpu_custom_call.1} parent=11 // pred_check
          %p182 = pneg %p86
        $region18: #{tpu_custom_call.1} parent=11 // pred_check_branch
          %184 = sbr.rel (%p182) target = $region20
        $region19: #{tpu_custom_call.1} parent=11 // pred_region
          _
        $region20: #{tpu_custom_call.1} parent=11 // pred_fallthru
          _
        // Predicated region
        $region21: #{tpu_custom_call.1} parent=11 // pred_check
          %p185 = pneg %p107
        $region22: #{tpu_custom_call.1} parent=11 // pred_check_branch
          %187 = sbr.rel (%p185) target = $region24
        $region23: #{tpu_custom_call.1} parent=11 // pred_region
          %s189 = ssub.s32 512, 512
          %190 = vsyncadd [#allocation6], %s189
          %s191 = sshll.u32 [#allocation7], 4
          %s192 = int_to_ptr.vmem [resolvable:$true] %s191
          %197 = dma.hbm_to_vmem [thread:$0]  %s3, 512, %s192, [#allocation6], 128, 128, 8
        $region24: #{tpu_custom_call.1} parent=11 // pred_fallthru
          _
        // Predicated region
        $region25: #{tpu_custom_call.1} parent=11 // pred_check
          %p198 = pneg %p128
        $region26: #{tpu_custom_call.1} parent=11 // pred_check_branch
          %200 = sbr.rel (%p198) target = $region28
        $region27: #{tpu_custom_call.1} parent=11 // pred_region
          _
        $region28: #{tpu_custom_call.1} parent=11 // pred_fallthru
          _
      $region12: #{tpu_custom_call.1} parent=5 // pred_fallthru
        _
      %p201 = scmp.lt.s32.totalorder %s18, 2
      // Predicated region
      $region29: #{tpu_custom_call.1} parent=5 // pred_check
        %p202 = pneg %p201
      $region30: #{tpu_custom_call.1} parent=5 // pred_check_branch
        %204 = sbr.rel (%p202) target = $region32
      $region31: #{tpu_custom_call.1} parent=5 // pred_region
        // Predicated region
        $region33: #{tpu_custom_call.1} parent=31 // pred_check
          %p205 = pneg %p38
        $region34: #{tpu_custom_call.1} parent=31 // pred_check_branch
          %207 = sbr.rel (%p205) target = $region36
        $region35: #{tpu_custom_call.1} parent=31 // pred_region
          %s208 = sand.u32 %s28, 1
          %s209 = scalar_lea.sflag [#allocation3], %s208
          %s210 = sand.u32 %s28, 1
          %s211 = smul.addr %s210, 8
          %s212 = scalar_lea.vmem [#allocation2], %s211
          %s214 = ssub.s32 128, 128
          %215 = vsyncadd %s209, %s214
          %s216 = smul.addr %s18, 128
          %s217 = scalar_lea.hbm %s0, %s216
          %s219 = sshll.u32 %s212, 4
          %s220 = int_to_ptr.vmem [resolvable:$true] %s219
          %222 = dma.hbm_to_vmem [thread:$0]  %s217, 128, %s220, %s209
        $region36: #{tpu_custom_call.1} parent=31 // pred_fallthru
          _
      $region32: #{tpu_custom_call.1} parent=5 // pred_fallthru
        _
      %p223 = scmp.le.s32.totalorder 1, %s18
      %p224 = scmp.lt.s32.totalorder %s18, 3
      %p225 = pnand %p223, %p224
      %p226 = pneg %p225
      // Predicated region
      $region37: #{tpu_custom_call.1} parent=5 // pred_check
        _
      $region38: #{tpu_custom_call.1} parent=5 // pred_check_branch
        %228 = sbr.rel (%p225) target = $region40
      $region39: #{tpu_custom_call.1} parent=5 // pred_region
        %s229 = ssub.s32 %s18, 1
        %s230 = sand.u32 %s31, 1
        %s231 = scalar_lea.sflag [#allocation3], %s230
        %s232 = sand.u32 %s31, 1
        %s233 = smul.addr %s232, 8
        %s234 = scalar_lea.vmem [#allocation2], %s233
        // Predicated region
        $region41: #{tpu_custom_call.1} parent=39 // pred_check
          %p235 = pneg %p44
        $region42: #{tpu_custom_call.1} parent=39 // pred_check_branch
          %237 = sbr.rel (%p235) target = $region44
        $region43: #{tpu_custom_call.1} parent=39 // pred_region
          %238 = dma.done %s231, 128
        $region44: #{tpu_custom_call.1} parent=39 // pred_fallthru
          _
        // Predicated region
        $region45: #{tpu_custom_call.1} parent=39 // pred_check
          %p239 = pneg %p65
        $region46: #{tpu_custom_call.1} parent=39 // pred_check_branch
          %241 = sbr.rel (%p239) target = $region48
        $region47: #{tpu_custom_call.1} parent=39 // pred_region
          %242 = dma.done [#allocation6], 512
        $region48: #{tpu_custom_call.1} parent=39 // pred_fallthru
          _
        // Predicated region
        $region49: #{tpu_custom_call.1} parent=39 // pred_check
          %p243 = pneg %p107
        $region50: #{tpu_custom_call.1} parent=39 // pred_check_branch
          %245 = sbr.rel (%p243) target = $region52
        $region51: #{tpu_custom_call.1} parent=39 // pred_region
          %246 = dma.done [#allocation6], 512
        $region52: #{tpu_custom_call.1} parent=39 // pred_fallthru
          _
        %s247 = sand.u32 %s31, 1
        %s248 = scalar_lea.sflag [#allocation3], %s247
        %s249 = sand.u32 %s31, 1
        %s250 = smul.addr %s249, 8
        %s251 = scalar_lea.vmem [#allocation2], %s250
        %p252 = pneg %p44
        %p253 = pneg %p41
        %p254 = pneg %p65
        %p255 = pneg %p62
        %p256 = pneg %p86
        %p257 = pneg %p83
        %p258 = pneg %p107
        %p259 = pneg %p104
        %p260 = pneg %p128
        %p261 = pneg %p125
        %p262 = pneg %p154
        %p263 = pneg %p151
        %s264 = sand.u32 %s141, 1
        %s265 = scalar_lea.sflag [#allocation4], %s264
        %s266 = sand.u32 %s141, 1
        %s267 = smul.addr %s266, 8
        %s268 = scalar_lea.vmem [#allocation8], %s267
        %v269 = vld [vmem:[%s234] sm:$0xff]
        %v270 = vld [vmem:[#allocation5] sm:$0xff]
        %v271 = vld [vmem:[#allocation5 + $0x8] sm:$0xff]
        %v272 = vld [vmem:[#allocation5 + $0x10] sm:$0xff]
        %v273 = vld [vmem:[#allocation5 + $0x18] sm:$0xff]
        %v274 = vld [vmem:[%s2] sm:$0x1]
        %v276 = vlaneseq
        %v277 = vshrl.u32 %v276, 7
        %v278 = vsub.s32 0, %v277
        %v279 = vrot.slane %v274, %v278
        %vm281 = vcmask 261120
        %v283 = vsel %vm281, %v269, 0
        %285 = vmatprep.subr.mxu0 0.0
        %286 = vmatpush1.msra.mxu0 %v270
        %287 = vmatprep.subr.mxu0 0.0
        %288 = vmatpush1.msra.mxu0 %v271
        %289 = vmatprep.subr.mxu0 0.0
        %290 = vmatpush1.msra.mxu0 %v272
        %291 = vmatprep.subr.mxu0 0.0
        %292 = vmatpush1.msra.mxu0 %v273
        %293 = vmatprep.subr.mxu0 0.0
        %294 = vmatpush1.msra.mxu0 0.0
        %295 = vmatprep.subr.mxu0 0.0
        %296 = vmatpush1.msra.mxu0 0.0
        %297 = vmatprep.subr.mxu0 0.0
        %298 = vmatpush1.msra.mxu0 0.0
        %299 = vmatprep.subr.mxu0 0.0
        %300 = vmatpush1.msra.mxu0 0.0
        %301 = vmatprep.subr.mxu0 0.0
        %302 = vmatpush1.msra.mxu0 0.0
        %303 = vmatprep.subr.mxu0 0.0
        %304 = vmatpush1.msra.mxu0 0.0
        %305 = vmatprep.subr.mxu0 0.0
        %306 = vmatpush1.msra.mxu0 0.0
        %307 = vmatprep.subr.mxu0 0.0
        %308 = vmatpush1.msra.mxu0 0.0
        %309 = vmatprep.subr.mxu0 0.0
        %310 = vmatpush1.msra.mxu0 0.0
        %311 = vmatprep.subr.mxu0 0.0
        %312 = vmatpush1.msra.mxu0 0.0
        %313 = vmatprep.subr.mxu0 0.0
        %314 = vmatpush1.msra.mxu0 0.0
        %315 = vmatprep.subr.mxu0 0.0
        %316 = vmatpush1.msra.mxu0 0.0
        %317 = vmatprep.subr.mxu0 0.0
        %318 = vmatpush1.msra.mxu0 0.0
        %319 = vmatprep.subr.mxu0 0.0
        %320 = vmatpush1.msra.mxu0 0.0
        %321 = vmatprep.subr.mxu0 0.0
        %322 = vmatpush1.msra.mxu0 0.0
        %323 = vmatprep.subr.mxu0 0.0
        %324 = vmatpush1.msra.mxu0 0.0
        %325 = vmatprep.subr.mxu0 0.0
        %326 = vmatpush1.msra.mxu0 0.0
        %327 = vmatprep.subr.mxu0 0.0
        %328 = vmatpush1.msra.mxu0 0.0
        %329 = vmatprep.subr.mxu0 0.0
        %330 = vmatpush1.msra.mxu0 0.0
        %331 = vmatprep.subr.mxu0 0.0
        %332 = vmatpush1.msra.mxu0 0.0
        %333 = vmatprep.subr.mxu0 0.0
        %334 = vmatpush1.msra.mxu0 0.0
        %335 = vmatprep.subr.mxu0 0.0
        %336 = vmatpush1.msra.mxu0 0.0
        %337 = vmatprep.subr.mxu0 0.0
        %338 = vmatpush1.msra.mxu0 0.0
        %339 = vmatprep.subr.mxu0 0.0
        %340 = vmatpush1.msra.mxu0 0.0
        %341 = vmatprep.subr.mxu0 0.0
        %342 = vmatpush1.msra.mxu0 0.0
        %343 = vmatprep.subr.mxu0 0.0
        %344 = vmatpush1.msra.mxu0 0.0
        %345 = vmatprep.subr.mxu0 0.0
        %346 = vmatpush1.msra.mxu0 0.0
        %347 = vmatprep.subr.mxu0 0.0
        %348 = vmatpush1.msra.mxu0 0.0
        %349 = vmatprep.mubr.f32.mxu0 0.0
        %350 = vmatmul.mubr.f32.gmra.mrb[0].mxu0 %v283
        %v351 = vpop.f32.mrb[0].mxu0
        %v352 = vadd.f32 %v279, %v351
        %v353 = vpop.f32.mrb[0].mxu0
        %354 = vdwg.mxu0
        %356 = vrot.lane.b32.xlu0 %v352, 96
        %v357 = vpop.permute.xlu0 %356
        %vm358 = vcmask 64512
        %v359 = vsel %vm358, %v352, 0
        %v361 = vsel %vm358, %v357, 0
        %363 = vmatprep.subr.mxu0 0.0
        %364 = vmatpush1.xpose.msra.mxu0 %v361
        %365 = vmatprep.subr.mxu0 0.0
        %366 = vmatpush1.xpose.msra.mxu0 0.0
        %367 = vmatprep.subr.mxu0 0.0
        %368 = vmatpush1.xpose.msra.mxu0 0.0
        %369 = vmatprep.subr.mxu0 0.0
        %370 = vmatpush1.xpose.msra.mxu0 0.0
        %371 = vmatprep.subr.mxu0 0.0
        %372 = vmatpush1.xpose.msra.mxu0 0.0
        %373 = vmatprep.subr.mxu0 0.0
        %374 = vmatpush1.xpose.msra.mxu0 0.0
        %375 = vmatprep.subr.mxu0 0.0
        %376 = vmatpush1.xpose.msra.mxu0 0.0
        %377 = vmatprep.subr.mxu0 0.0
        %378 = vmatpush1.xpose.msra.mxu0 0.0
        %379 = vmatprep.subr.mxu0 0.0
        %380 = vmatpush1.xpose.msra.mxu0 0.0
        %381 = vmatprep.subr.mxu0 0.0
        %382 = vmatpush1.xpose.msra.mxu0 0.0
        %383 = vmatprep.subr.mxu0 0.0
        %384 = vmatpush1.xpose.msra.mxu0 0.0
        %385 = vmatprep.subr.mxu0 0.0
        %386 = vmatpush1.xpose.msra.mxu0 0.0
        %387 = vmatprep.subr.mxu0 0.0
        %388 = vmatpush1.xpose.msra.mxu0 0.0
        %389 = vmatprep.subr.mxu0 0.0
        %390 = vmatpush1.xpose.msra.mxu0 0.0
        %391 = vmatprep.subr.mxu0 0.0
        %392 = vmatpush1.xpose.msra.mxu0 0.0
        %393 = vmatprep.subr.mxu0 0.0
        %394 = vmatpush1.xpose.msra.mxu0 0.0
        %395 = vmatprep.subr.mxu0 0.0
        %396 = vmatpush1.xpose.msra.mxu0 0.0
        %397 = vmatprep.subr.mxu0 0.0
        %398 = vmatpush1.xpose.msra.mxu0 0.0
        %399 = vmatprep.subr.mxu0 0.0
        %400 = vmatpush1.xpose.msra.mxu0 0.0
        %401 = vmatprep.subr.mxu0 0.0
        %402 = vmatpush1.xpose.msra.mxu0 0.0
        %403 = vmatprep.subr.mxu0 0.0
        %404 = vmatpush1.xpose.msra.mxu0 0.0
        %405 = vmatprep.subr.mxu0 0.0
        %406 = vmatpush1.xpose.msra.mxu0 0.0
        %407 = vmatprep.subr.mxu0 0.0
        %408 = vmatpush1.xpose.msra.mxu0 0.0
        %409 = vmatprep.subr.mxu0 0.0
        %410 = vmatpush1.xpose.msra.mxu0 0.0
        %411 = vmatprep.subr.mxu0 0.0
        %412 = vmatpush1.xpose.msra.mxu0 0.0
        %413 = vmatprep.subr.mxu0 0.0
        %414 = vmatpush1.xpose.msra.mxu0 0.0
        %415 = vmatprep.subr.mxu0 0.0
        %416 = vmatpush1.xpose.msra.mxu0 0.0
        %417 = vmatprep.subr.mxu0 0.0
        %418 = vmatpush1.xpose.msra.mxu0 0.0
        %419 = vmatprep.subr.mxu0 0.0
        %420 = vmatpush1.xpose.msra.mxu0 0.0
        %421 = vmatprep.subr.mxu0 0.0
        %422 = vmatpush1.xpose.msra.mxu0 0.0
        %423 = vmatprep.subr.mxu0 0.0
        %424 = vmatpush1.xpose.msra.mxu0 0.0
        %425 = vmatprep.subr.mxu0 0.0
        %426 = vmatpush1.xpose.msra.mxu0 0.0
        %427 = vmatprep.mubr.f32.mxu0 0.0
        %428 = vmatmul.mubr.f32.gmra.mrb[0].mxu0 %v359
        %v429 = vpop.f32.mrb[0].mxu0
        %v430 = vadd.f32 0.0, %v429
        %v431 = vpop.f32.mrb[0].mxu0
        %432 = vdwg.mxu0
        %v433 = vsel %vm358, %v430, -inf
        %434 = vmax.xlane.f32.xlu0 %v433
        %v435 = vpop.xlane.xlu0 %434
        %v436 = vsub.f32 %v430, %v435
        %v437 = vmul.f32 %v436, 1.442695
        %v438 = vpow.pop %v437
        %v439 = vsel %vm358, %v438, 0.0
        %440 = vadd.xlane.f32.xlu0 %v439
        %v441 = vpop.xlane.xlu0 %440
        %442 = vrot.lane.b32.xlu0 %v352, 64
        %v443 = vpop.permute.xlu0 %442
        %v446 = vsel %vm358, %v438, 0
        %448 = vmatprep.subr.mxu0 0.0
        %449 = vmatpush1.msra.mxu0 %v443
        %450 = vmatprep.subr.mxu0 0.0
        %451 = vmatpush1.msra.mxu0 0.0
        %452 = vmatprep.subr.mxu0 0.0
        %453 = vmatpush1.msra.mxu0 0.0
        %454 = vmatprep.subr.mxu0 0.0
        %455 = vmatpush1.msra.mxu0 0.0
        %456 = vmatprep.subr.mxu0 0.0
        %457 = vmatpush1.msra.mxu0 0.0
        %458 = vmatprep.subr.mxu0 0.0
        %459 = vmatpush1.msra.mxu0 0.0
        %460 = vmatprep.subr.mxu0 0.0
        %461 = vmatpush1.msra.mxu0 0.0
        %462 = vmatprep.subr.mxu0 0.0
        %463 = vmatpush1.msra.mxu0 0.0
        %464 = vmatprep.subr.mxu0 0.0
        %465 = vmatpush1.msra.mxu0 0.0
        %466 = vmatprep.subr.mxu0 0.0
        %467 = vmatpush1.msra.mxu0 0.0
        %468 = vmatprep.subr.mxu0 0.0
        %469 = vmatpush1.msra.mxu0 0.0
        %470 = vmatprep.subr.mxu0 0.0
        %471 = vmatpush1.msra.mxu0 0.0
        %472 = vmatprep.subr.mxu0 0.0
        %473 = vmatpush1.msra.mxu0 0.0
        %474 = vmatprep.subr.mxu0 0.0
        %475 = vmatpush1.msra.mxu0 0.0
        %476 = vmatprep.subr.mxu0 0.0
        %477 = vmatpush1.msra.mxu0 0.0
        %478 = vmatprep.subr.mxu0 0.0
        %479 = vmatpush1.msra.mxu0 0.0
        %480 = vmatprep.subr.mxu0 0.0
        %481 = vmatpush1.msra.mxu0 0.0
        %482 = vmatprep.subr.mxu0 0.0
        %483 = vmatpush1.msra.mxu0 0.0
        %484 = vmatprep.subr.mxu0 0.0
        %485 = vmatpush1.msra.mxu0 0.0
        %486 = vmatprep.subr.mxu0 0.0
        %487 = vmatpush1.msra.mxu0 0.0
        %488 = vmatprep.subr.mxu0 0.0
        %489 = vmatpush1.msra.mxu0 0.0
        %490 = vmatprep.subr.mxu0 0.0
        %491 = vmatpush1.msra.mxu0 0.0
        %492 = vmatprep.subr.mxu0 0.0
        %493 = vmatpush1.msra.mxu0 0.0
        %494 = vmatprep.subr.mxu0 0.0
        %495 = vmatpush1.msra.mxu0 0.0
        %496 = vmatprep.subr.mxu0 0.0
        %497 = vmatpush1.msra.mxu0 0.0
        %498 = vmatprep.subr.mxu0 0.0
        %499 = vmatpush1.msra.mxu0 0.0
        %500 = vmatprep.subr.mxu0 0.0
        %501 = vmatpush1.msra.mxu0 0.0
        %502 = vmatprep.subr.mxu0 0.0
        %503 = vmatpush1.msra.mxu0 0.0
        %504 = vmatprep.subr.mxu0 0.0
        %505 = vmatpush1.msra.mxu0 0.0
        %506 = vmatprep.subr.mxu0 0.0
        %507 = vmatpush1.msra.mxu0 0.0
        %508 = vmatprep.subr.mxu0 0.0
        %509 = vmatpush1.msra.mxu0 0.0
        %510 = vmatprep.subr.mxu0 0.0
        %511 = vmatpush1.msra.mxu0 0.0
        %512 = vmatprep.mubr.f32.mxu0 0.0
        %513 = vmatmul.mubr.f32.gmra.mrb[0].mxu0 %v446
        %v514 = vpop.f32.mrb[0].mxu0
        %v515 = vadd.f32 0.0, %v514
        %v516 = vpop.f32.mrb[0].mxu0
        %517 = vdwg.mxu0
        %v518 = vrcp.pop %v441
        %v519 = vmul.f32 %v515, %v518
        %v520 = vld [vmem:[#allocation7] sm:$0xff]
        %521 = vrot.lane.b32.xlu0 %v352, 120
        %v522 = vpop.permute.xlu0 %521
        %523 = vrot.lane.b32.xlu0 %v352, 88
        %v524 = vpop.permute.xlu0 %523
        %v525 = vsel %vm358, %v522, 0
        %v527 = vsel %vm358, %v524, 0
        %529 = vmatprep.subr.mxu0 0.0
        %530 = vmatpush1.xpose.msra.mxu0 %v527
        %531 = vmatprep.subr.mxu0 0.0
        %532 = vmatpush1.xpose.msra.mxu0 0.0
        %533 = vmatprep.subr.mxu0 0.0
        %534 = vmatpush1.xpose.msra.mxu0 0.0
        %535 = vmatprep.subr.mxu0 0.0
        %536 = vmatpush1.xpose.msra.mxu0 0.0
        %537 = vmatprep.subr.mxu0 0.0
        %538 = vmatpush1.xpose.msra.mxu0 0.0
        %539 = vmatprep.subr.mxu0 0.0
        %540 = vmatpush1.xpose.msra.mxu0 0.0
        %541 = vmatprep.subr.mxu0 0.0
        %542 = vmatpush1.xpose.msra.mxu0 0.0
        %543 = vmatprep.subr.mxu0 0.0
        %544 = vmatpush1.xpose.msra.mxu0 0.0
        %545 = vmatprep.subr.mxu0 0.0
        %546 = vmatpush1.xpose.msra.mxu0 0.0
        %547 = vmatprep.subr.mxu0 0.0
        %548 = vmatpush1.xpose.msra.mxu0 0.0
        %549 = vmatprep.subr.mxu0 0.0
        %550 = vmatpush1.xpose.msra.mxu0 0.0
        %551 = vmatprep.subr.mxu0 0.0
        %552 = vmatpush1.xpose.msra.mxu0 0.0
        %553 = vmatprep.subr.mxu0 0.0
        %554 = vmatpush1.xpose.msra.mxu0 0.0
        %555 = vmatprep.subr.mxu0 0.0
        %556 = vmatpush1.xpose.msra.mxu0 0.0
        %557 = vmatprep.subr.mxu0 0.0
        %558 = vmatpush1.xpose.msra.mxu0 0.0
        %559 = vmatprep.subr.mxu0 0.0
        %560 = vmatpush1.xpose.msra.mxu0 0.0
        %561 = vmatprep.subr.mxu0 0.0
        %562 = vmatpush1.xpose.msra.mxu0 0.0
        %563 = vmatprep.subr.mxu0 0.0
        %564 = vmatpush1.xpose.msra.mxu0 0.0
        %565 = vmatprep.subr.mxu0 0.0
        %566 = vmatpush1.xpose.msra.mxu0 0.0
        %567 = vmatprep.subr.mxu0 0.0
        %568 = vmatpush1.xpose.msra.mxu0 0.0
        %569 = vmatprep.subr.mxu0 0.0
        %570 = vmatpush1.xpose.msra.mxu0 0.0
        %571 = vmatprep.subr.mxu0 0.0
        %572 = vmatpush1.xpose.msra.mxu0 0.0
        %573 = vmatprep.subr.mxu0 0.0
        %574 = vmatpush1.xpose.msra.mxu0 0.0
        %575 = vmatprep.subr.mxu0 0.0
        %576 = vmatpush1.xpose.msra.mxu0 0.0
        %577 = vmatprep.subr.mxu0 0.0
        %578 = vmatpush1.xpose.msra.mxu0 0.0
        %579 = vmatprep.subr.mxu0 0.0
        %580 = vmatpush1.xpose.msra.mxu0 0.0
        %581 = vmatprep.subr.mxu0 0.0
        %582 = vmatpush1.xpose.msra.mxu0 0.0
        %583 = vmatprep.subr.mxu0 0.0
        %584 = vmatpush1.xpose.msra.mxu0 0.0
        %585 = vmatprep.subr.mxu0 0.0
        %586 = vmatpush1.xpose.msra.mxu0 0.0
        %587 = vmatprep.subr.mxu0 0.0
        %588 = vmatpush1.xpose.msra.mxu0 0.0
        %589 = vmatprep.subr.mxu0 0.0
        %590 = vmatpush1.xpose.msra.mxu0 0.0
        %591 = vmatprep.subr.mxu0 0.0
        %592 = vmatpush1.xpose.msra.mxu0 0.0
        %593 = vmatprep.mubr.f32.mxu0 0.0
        %594 = vmatmul.mubr.f32.gmra.mrb[0].mxu0 %v525
        %v595 = vpop.f32.mrb[0].mxu0
        %v596 = vadd.f32 0.0, %v595
        %v597 = vpop.f32.mrb[0].mxu0
        %598 = vdwg.mxu0
        %v599 = vsel %vm358, %v596, -inf
        %600 = vmax.xlane.f32.xlu0 %v599
        %v601 = vpop.xlane.xlu0 %600
        %v602 = vsub.f32 %v596, %v601
        %v603 = vmul.f32 %v602, 1.442695
        %v604 = vpow.pop %v603
        %v605 = vsel %vm358, %v604, 0.0
        %606 = vadd.xlane.f32.xlu0 %v605
        %v607 = vpop.xlane.xlu0 %606
        %608 = vrot.lane.b32.xlu0 %v352, 56
        %v609 = vpop.permute.xlu0 %608
        %v612 = vsel %vm358, %v604, 0
        %614 = vmatprep.subr.mxu0 0.0
        %615 = vmatpush1.msra.mxu0 %v609
        %616 = vmatprep.subr.mxu0 0.0
        %617 = vmatpush1.msra.mxu0 0.0
        %618 = vmatprep.subr.mxu0 0.0
        %619 = vmatpush1.msra.mxu0 0.0
        %620 = vmatprep.subr.mxu0 0.0
        %621 = vmatpush1.msra.mxu0 0.0
        %622 = vmatprep.subr.mxu0 0.0
        %623 = vmatpush1.msra.mxu0 0.0
        %624 = vmatprep.subr.mxu0 0.0
        %625 = vmatpush1.msra.mxu0 0.0
        %626 = vmatprep.subr.mxu0 0.0
        %627 = vmatpush1.msra.mxu0 0.0
        %628 = vmatprep.subr.mxu0 0.0
        %629 = vmatpush1.msra.mxu0 0.0
        %630 = vmatprep.subr.mxu0 0.0
        %631 = vmatpush1.msra.mxu0 0.0
        %632 = vmatprep.subr.mxu0 0.0
        %633 = vmatpush1.msra.mxu0 0.0
        %634 = vmatprep.subr.mxu0 0.0
        %635 = vmatpush1.msra.mxu0 0.0
        %636 = vmatprep.subr.mxu0 0.0
        %637 = vmatpush1.msra.mxu0 0.0
        %638 = vmatprep.subr.mxu0 0.0
        %639 = vmatpush1.msra.mxu0 0.0
        %640 = vmatprep.subr.mxu0 0.0
        %641 = vmatpush1.msra.mxu0 0.0
        %642 = vmatprep.subr.mxu0 0.0
        %643 = vmatpush1.msra.mxu0 0.0
        %644 = vmatprep.subr.mxu0 0.0
        %645 = vmatpush1.msra.mxu0 0.0
        %646 = vmatprep.subr.mxu0 0.0
        %647 = vmatpush1.msra.mxu0 0.0
        %648 = vmatprep.subr.mxu0 0.0
        %649 = vmatpush1.msra.mxu0 0.0
        %650 = vmatprep.subr.mxu0 0.0
        %651 = vmatpush1.msra.mxu0 0.0
        %652 = vmatprep.subr.mxu0 0.0
        %653 = vmatpush1.msra.mxu0 0.0
        %654 = vmatprep.subr.mxu0 0.0
        %655 = vmatpush1.msra.mxu0 0.0
        %656 = vmatprep.subr.mxu0 0.0
        %657 = vmatpush1.msra.mxu0 0.0
        %658 = vmatprep.subr.mxu0 0.0
        %659 = vmatpush1.msra.mxu0 0.0
        %660 = vmatprep.subr.mxu0 0.0
        %661 = vmatpush1.msra.mxu0 0.0
        %662 = vmatprep.subr.mxu0 0.0
        %663 = vmatpush1.msra.mxu0 0.0
        %664 = vmatprep.subr.mxu0 0.0
        %665 = vmatpush1.msra.mxu0 0.0
        %666 = vmatprep.subr.mxu0 0.0
        %667 = vmatpush1.msra.mxu0 0.0
        %668 = vmatprep.subr.mxu0 0.0
        %669 = vmatpush1.msra.mxu0 0.0
        %670 = vmatprep.subr.mxu0 0.0
        %671 = vmatpush1.msra.mxu0 0.0
        %672 = vmatprep.subr.mxu0 0.0
        %673 = vmatpush1.msra.mxu0 0.0
        %674 = vmatprep.subr.mxu0 0.0
        %675 = vmatpush1.msra.mxu0 0.0
        %676 = vmatprep.subr.mxu0 0.0
        %677 = vmatpush1.msra.mxu0 0.0
        %678 = vmatprep.mubr.f32.mxu0 0.0
        %679 = vmatmul.mubr.f32.gmra.mrb[0].mxu0 %v612
        %v680 = vpop.f32.mrb[0].mxu0
        %v681 = vadd.f32 0.0, %v680
        %v682 = vpop.f32.mrb[0].mxu0
        %683 = vdwg.mxu0
        %v684 = vrcp.pop %v607
        %v685 = vmul.f32 %v681, %v684
        %v686 = vld [vmem:[#allocation7 + $0x8] sm:$0xff]
        %v688 = vsel %vm358, %v685, 0
        %690 = vmatprep.subr.mxu0 0.0
        %691 = vmatpush1.msra.mxu0 %v686
        %692 = vmatprep.subr.mxu0 0.0
        %693 = vmatpush1.msra.mxu0 0.0
        %694 = vmatprep.subr.mxu0 0.0
        %695 = vmatpush1.msra.mxu0 0.0
        %696 = vmatprep.subr.mxu0 0.0
        %697 = vmatpush1.msra.mxu0 0.0
        %698 = vmatprep.subr.mxu0 0.0
        %699 = vmatpush1.msra.mxu0 0.0
        %700 = vmatprep.subr.mxu0 0.0
        %701 = vmatpush1.msra.mxu0 0.0
        %702 = vmatprep.subr.mxu0 0.0
        %703 = vmatpush1.msra.mxu0 0.0
        %704 = vmatprep.subr.mxu0 0.0
        %705 = vmatpush1.msra.mxu0 0.0
        %706 = vmatprep.subr.mxu0 0.0
        %707 = vmatpush1.msra.mxu0 0.0
        %708 = vmatprep.subr.mxu0 0.0
        %709 = vmatpush1.msra.mxu0 0.0
        %710 = vmatprep.subr.mxu0 0.0
        %711 = vmatpush1.msra.mxu0 0.0
        %712 = vmatprep.subr.mxu0 0.0
        %713 = vmatpush1.msra.mxu0 0.0
        %714 = vmatprep.subr.mxu0 0.0
        %715 = vmatpush1.msra.mxu0 0.0
        %716 = vmatprep.subr.mxu0 0.0
        %717 = vmatpush1.msra.mxu0 0.0
        %718 = vmatprep.subr.mxu0 0.0
        %719 = vmatpush1.msra.mxu0 0.0
        %720 = vmatprep.subr.mxu0 0.0
        %721 = vmatpush1.msra.mxu0 0.0
        %722 = vmatprep.subr.mxu0 0.0
        %723 = vmatpush1.msra.mxu0 0.0
        %724 = vmatprep.subr.mxu0 0.0
        %725 = vmatpush1.msra.mxu0 0.0
        %726 = vmatprep.subr.mxu0 0.0
        %727 = vmatpush1.msra.mxu0 0.0
        %728 = vmatprep.subr.mxu0 0.0
        %729 = vmatpush1.msra.mxu0 0.0
        %730 = vmatprep.subr.mxu0 0.0
        %731 = vmatpush1.msra.mxu0 0.0
        %732 = vmatprep.subr.mxu0 0.0
        %733 = vmatpush1.msra.mxu0 0.0
        %734 = vmatprep.subr.mxu0 0.0
        %735 = vmatpush1.msra.mxu0 0.0
        %736 = vmatprep.subr.mxu0 0.0
        %737 = vmatpush1.msra.mxu0 0.0
        %738 = vmatprep.subr.mxu0 0.0
        %739 = vmatpush1.msra.mxu0 0.0
        %740 = vmatprep.subr.mxu0 0.0
        %741 = vmatpush1.msra.mxu0 0.0
        %742 = vmatprep.subr.mxu0 0.0
        %743 = vmatpush1.msra.mxu0 0.0
        %744 = vmatprep.subr.mxu0 0.0
        %745 = vmatpush1.msra.mxu0 0.0
        %746 = vmatprep.subr.mxu0 0.0
        %747 = vmatpush1.msra.mxu0 0.0
        %748 = vmatprep.subr.mxu0 0.0
        %749 = vmatpush1.msra.mxu0 0.0
        %750 = vmatprep.subr.mxu0 0.0
        %751 = vmatpush1.msra.mxu0 0.0
        %752 = vmatprep.subr.mxu0 0.0
        %753 = vmatpush1.msra.mxu0 0.0
        %754 = vmatprep.mubr.f32.mxu0 0.0
        %755 = vmatmul.mubr.f32.gmra.mrb[0].mxu0 %v688
        %v756 = vpop.f32.mrb[0].mxu0
        %v757 = vadd.f32 0.0, %v756
        %v758 = vpop.f32.mrb[0].mxu0
        %759 = vdwg.mxu0
        %v761 = vsel %vm358, %v519, 0
        %763 = vmatprep.subr.mxu0 0.0
        %764 = vmatpush1.msra.mxu0 %v520
        %765 = vmatprep.subr.mxu0 0.0
        %766 = vmatpush1.msra.mxu0 0.0
        %767 = vmatprep.subr.mxu0 0.0
        %768 = vmatpush1.msra.mxu0 0.0
        %769 = vmatprep.subr.mxu0 0.0
        %770 = vmatpush1.msra.mxu0 0.0
        %771 = vmatprep.subr.mxu0 0.0
        %772 = vmatpush1.msra.mxu0 0.0
        %773 = vmatprep.subr.mxu0 0.0
        %774 = vmatpush1.msra.mxu0 0.0
        %775 = vmatprep.subr.mxu0 0.0
        %776 = vmatpush1.msra.mxu0 0.0
        %777 = vmatprep.subr.mxu0 0.0
        %778 = vmatpush1.msra.mxu0 0.0
        %779 = vmatprep.subr.mxu0 0.0
        %780 = vmatpush1.msra.mxu0 0.0
        %781 = vmatprep.subr.mxu0 0.0
        %782 = vmatpush1.msra.mxu0 0.0
        %783 = vmatprep.subr.mxu0 0.0
        %784 = vmatpush1.msra.mxu0 0.0
        %785 = vmatprep.subr.mxu0 0.0
        %786 = vmatpush1.msra.mxu0 0.0
        %787 = vmatprep.subr.mxu0 0.0
        %788 = vmatpush1.msra.mxu0 0.0
        %789 = vmatprep.subr.mxu0 0.0
        %790 = vmatpush1.msra.mxu0 0.0
        %791 = vmatprep.subr.mxu0 0.0
        %792 = vmatpush1.msra.mxu0 0.0
        %793 = vmatprep.subr.mxu0 0.0
        %794 = vmatpush1.msra.mxu0 0.0
        %795 = vmatprep.subr.mxu0 0.0
        %796 = vmatpush1.msra.mxu0 0.0
        %797 = vmatprep.subr.mxu0 0.0
        %798 = vmatpush1.msra.mxu0 0.0
        %799 = vmatprep.subr.mxu0 0.0
        %800 = vmatpush1.msra.mxu0 0.0
        %801 = vmatprep.subr.mxu0 0.0
        %802 = vmatpush1.msra.mxu0 0.0
        %803 = vmatprep.subr.mxu0 0.0
        %804 = vmatpush1.msra.mxu0 0.0
        %805 = vmatprep.subr.mxu0 0.0
        %806 = vmatpush1.msra.mxu0 0.0
        %807 = vmatprep.subr.mxu0 0.0
        %808 = vmatpush1.msra.mxu0 0.0
        %809 = vmatprep.subr.mxu0 0.0
        %810 = vmatpush1.msra.mxu0 0.0
        %811 = vmatprep.subr.mxu0 0.0
        %812 = vmatpush1.msra.mxu0 0.0
        %813 = vmatprep.subr.mxu0 0.0
        %814 = vmatpush1.msra.mxu0 0.0
        %815 = vmatprep.subr.mxu0 0.0
        %816 = vmatpush1.msra.mxu0 0.0
        %817 = vmatprep.subr.mxu0 0.0
        %818 = vmatpush1.msra.mxu0 0.0
        %819 = vmatprep.subr.mxu0 0.0
        %820 = vmatpush1.msra.mxu0 0.0
        %821 = vmatprep.subr.mxu0 0.0
        %822 = vmatpush1.msra.mxu0 0.0
        %823 = vmatprep.subr.mxu0 0.0
        %824 = vmatpush1.msra.mxu0 0.0
        %825 = vmatprep.subr.mxu0 0.0
        %826 = vmatpush1.msra.mxu0 0.0
        %827 = vmatprep.mubr.f32.mxu0 0.0
        %828 = vmatmul.mubr.f32.gmra.mrb[0].mxu0 %v761
        %v829 = vpop.f32.mrb[0].mxu0
        %v830 = vadd.f32 %v757, %v829
        %v831 = vpop.f32.mrb[0].mxu0
        %832 = vdwg.mxu0
        %833 = vrot.lane.b32.xlu0 %v352, 112
        %v834 = vpop.permute.xlu0 %833
        %835 = vrot.lane.b32.xlu0 %v352, 80
        %v836 = vpop.permute.xlu0 %835
        %v837 = vsel %vm358, %v834, 0
        %v839 = vsel %vm358, %v836, 0
        %841 = vmatprep.subr.mxu0 0.0
        %842 = vmatpush1.xpose.msra.mxu0 %v839
        %843 = vmatprep.subr.mxu0 0.0
        %844 = vmatpush1.xpose.msra.mxu0 0.0
        %845 = vmatprep.subr.mxu0 0.0
        %846 = vmatpush1.xpose.msra.mxu0 0.0
        %847 = vmatprep.subr.mxu0 0.0
        %848 = vmatpush1.xpose.msra.mxu0 0.0
        %849 = vmatprep.subr.mxu0 0.0
        %850 = vmatpush1.xpose.msra.mxu0 0.0
        %851 = vmatprep.subr.mxu0 0.0
        %852 = vmatpush1.xpose.msra.mxu0 0.0
        %853 = vmatprep.subr.mxu0 0.0
        %854 = vmatpush1.xpose.msra.mxu0 0.0
        %855 = vmatprep.subr.mxu0 0.0
        %856 = vmatpush1.xpose.msra.mxu0 0.0
        %857 = vmatprep.subr.mxu0 0.0
        %858 = vmatpush1.xpose.msra.mxu0 0.0
        %859 = vmatprep.subr.mxu0 0.0
        %860 = vmatpush1.xpose.msra.mxu0 0.0
        %861 = vmatprep.subr.mxu0 0.0
        %862 = vmatpush1.xpose.msra.mxu0 0.0
        %863 = vmatprep.subr.mxu0 0.0
        %864 = vmatpush1.xpose.msra.mxu0 0.0
        %865 = vmatprep.subr.mxu0 0.0
        %866 = vmatpush1.xpose.msra.mxu0 0.0
        %867 = vmatprep.subr.mxu0 0.0
        %868 = vmatpush1.xpose.msra.mxu0 0.0
        %869 = vmatprep.subr.mxu0 0.0
        %870 = vmatpush1.xpose.msra.mxu0 0.0
        %871 = vmatprep.subr.mxu0 0.0
        %872 = vmatpush1.xpose.msra.mxu0 0.0
        %873 = vmatprep.subr.mxu0 0.0
        %874 = vmatpush1.xpose.msra.mxu0 0.0
        %875 = vmatprep.subr.mxu0 0.0
        %876 = vmatpush1.xpose.msra.mxu0 0.0
        %877 = vmatprep.subr.mxu0 0.0
        %878 = vmatpush1.xpose.msra.mxu0 0.0
        %879 = vmatprep.subr.mxu0 0.0
        %880 = vmatpush1.xpose.msra.mxu0 0.0
        %881 = vmatprep.subr.mxu0 0.0
        %882 = vmatpush1.xpose.msra.mxu0 0.0
        %883 = vmatprep.subr.mxu0 0.0
        %884 = vmatpush1.xpose.msra.mxu0 0.0
        %885 = vmatprep.subr.mxu0 0.0
        %886 = vmatpush1.xpose.msra.mxu0 0.0
        %887 = vmatprep.subr.mxu0 0.0
        %888 = vmatpush1.xpose.msra.mxu0 0.0
        %889 = vmatprep.subr.mxu0 0.0
        %890 = vmatpush1.xpose.msra.mxu0 0.0
        %891 = vmatprep.subr.mxu0 0.0
        %892 = vmatpush1.xpose.msra.mxu0 0.0
        %893 = vmatprep.subr.mxu0 0.0
        %894 = vmatpush1.xpose.msra.mxu0 0.0
        %895 = vmatprep.subr.mxu0 0.0
        %896 = vmatpush1.xpose.msra.mxu0 0.0
        %897 = vmatprep.subr.mxu0 0.0
        %898 = vmatpush1.xpose.msra.mxu0 0.0
        %899 = vmatprep.subr.mxu0 0.0
        %900 = vmatpush1.xpose.msra.mxu0 0.0
        %901 = vmatprep.subr.mxu0 0.0
        %902 = vmatpush1.xpose.msra.mxu0 0.0
        %903 = vmatprep.subr.mxu0 0.0
        %904 = vmatpush1.xpose.msra.mxu0 0.0
        %905 = vmatprep.mubr.f32.mxu0 0.0
        %906 = vmatmul.mubr.f32.gmra.mrb[0].mxu0 %v837
        %v907 = vpop.f32.mrb[0].mxu0
        %v908 = vadd.f32 0.0, %v907
        %v909 = vpop.f32.mrb[0].mxu0
        %910 = vdwg.mxu0
        %v911 = vsel %vm358, %v908, -inf
        %912 = vmax.xlane.f32.xlu0 %v911
        %v913 = vpop.xlane.xlu0 %912
        %v914 = vsub.f32 %v908, %v913
        %v915 = vmul.f32 %v914, 1.442695
        %v916 = vpow.pop %v915
        %v917 = vsel %vm358, %v916, 0.0
        %918 = vadd.xlane.f32.xlu0 %v917
        %v919 = vpop.xlane.xlu0 %918
        %920 = vrot.lane.b32.xlu0 %v352, 48
        %v921 = vpop.permute.xlu0 %920
        %v924 = vsel %vm358, %v916, 0
        %926 = vmatprep.subr.mxu0 0.0
        %927 = vmatpush1.msra.mxu0 %v921
        %928 = vmatprep.subr.mxu0 0.0
        %929 = vmatpush1.msra.mxu0 0.0
        %930 = vmatprep.subr.mxu0 0.0
        %931 = vmatpush1.msra.mxu0 0.0
        %932 = vmatprep.subr.mxu0 0.0
        %933 = vmatpush1.msra.mxu0 0.0
        %934 = vmatprep.subr.mxu0 0.0
        %935 = vmatpush1.msra.mxu0 0.0
        %936 = vmatprep.subr.mxu0 0.0
        %937 = vmatpush1.msra.mxu0 0.0
        %938 = vmatprep.subr.mxu0 0.0
        %939 = vmatpush1.msra.mxu0 0.0
        %940 = vmatprep.subr.mxu0 0.0
        %941 = vmatpush1.msra.mxu0 0.0
        %942 = vmatprep.subr.mxu0 0.0
        %943 = vmatpush1.msra.mxu0 0.0
        %944 = vmatprep.subr.mxu0 0.0
        %945 = vmatpush1.msra.mxu0 0.0
        %946 = vmatprep.subr.mxu0 0.0
        %947 = vmatpush1.msra.mxu0 0.0
        %948 = vmatprep.subr.mxu0 0.0
        %949 = vmatpush1.msra.mxu0 0.0
        %950 = vmatprep.subr.mxu0 0.0
        %951 = vmatpush1.msra.mxu0 0.0
        %952 = vmatprep.subr.mxu0 0.0
        %953 = vmatpush1.msra.mxu0 0.0
        %954 = vmatprep.subr.mxu0 0.0
        %955 = vmatpush1.msra.mxu0 0.0
        %956 = vmatprep.subr.mxu0 0.0
        %957 = vmatpush1.msra.mxu0 0.0
        %958 = vmatprep.subr.mxu0 0.0
        %959 = vmatpush1.msra.mxu0 0.0
        %960 = vmatprep.subr.mxu0 0.0
        %961 = vmatpush1.msra.mxu0 0.0
        %962 = vmatprep.subr.mxu0 0.0
        %963 = vmatpush1.msra.mxu0 0.0
        %964 = vmatprep.subr.mxu0 0.0
        %965 = vmatpush1.msra.mxu0 0.0
        %966 = vmatprep.subr.mxu0 0.0
        %967 = vmatpush1.msra.mxu0 0.0
        %968 = vmatprep.subr.mxu0 0.0
        %969 = vmatpush1.msra.mxu0 0.0
        %970 = vmatprep.subr.mxu0 0.0
        %971 = vmatpush1.msra.mxu0 0.0
        %972 = vmatprep.subr.mxu0 0.0
        %973 = vmatpush1.msra.mxu0 0.0
        %974 = vmatprep.subr.mxu0 0.0
        %975 = vmatpush1.msra.mxu0 0.0
        %976 = vmatprep.subr.mxu0 0.0
        %977 = vmatpush1.msra.mxu0 0.0
        %978 = vmatprep.subr.mxu0 0.0
        %979 = vmatpush1.msra.mxu0 0.0
        %980 = vmatprep.subr.mxu0 0.0
        %981 = vmatpush1.msra.mxu0 0.0
        %982 = vmatprep.subr.mxu0 0.0
        %983 = vmatpush1.msra.mxu0 0.0
        %984 = vmatprep.subr.mxu0 0.0
        %985 = vmatpush1.msra.mxu0 0.0
        %986 = vmatprep.subr.mxu0 0.0
        %987 = vmatpush1.msra.mxu0 0.0
        %988 = vmatprep.subr.mxu0 0.0
        %989 = vmatpush1.msra.mxu0 0.0
        %990 = vmatprep.mubr.f32.mxu0 0.0
        %991 = vmatmul.mubr.f32.gmra.mrb[0].mxu0 %v924
        %v992 = vpop.f32.mrb[0].mxu0
        %v993 = vadd.f32 0.0, %v992
        %v994 = vpop.f32.mrb[0].mxu0
        %995 = vdwg.mxu0
        %v996 = vrcp.pop %v919
        %v997 = vmul.f32 %v993, %v996
        %v998 = vld [vmem:[#allocation7 + $0x10] sm:$0xff]
        %v1000 = vsel %vm358, %v997, 0
        %1002 = vmatprep.subr.mxu0 0.0
        %1003 = vmatpush1.msra.mxu0 %v998
        %1004 = vmatprep.subr.mxu0 0.0
        %1005 = vmatpush1.msra.mxu0 0.0
        %1006 = vmatprep.subr.mxu0 0.0
        %1007 = vmatpush1.msra.mxu0 0.0
        %1008 = vmatprep.subr.mxu0 0.0
        %1009 = vmatpush1.msra.mxu0 0.0
        %1010 = vmatprep.subr.mxu0 0.0
        %1011 = vmatpush1.msra.mxu0 0.0
        %1012 = vmatprep.subr.mxu0 0.0
        %1013 = vmatpush1.msra.mxu0 0.0
        %1014 = vmatprep.subr.mxu0 0.0
        %1015 = vmatpush1.msra.mxu0 0.0
        %1016 = vmatprep.subr.mxu0 0.0
        %1017 = vmatpush1.msra.mxu0 0.0
        %1018 = vmatprep.subr.mxu0 0.0
        %1019 = vmatpush1.msra.mxu0 0.0
        %1020 = vmatprep.subr.mxu0 0.0
        %1021 = vmatpush1.msra.mxu0 0.0
        %1022 = vmatprep.subr.mxu0 0.0
        %1023 = vmatpush1.msra.mxu0 0.0
        %1024 = vmatprep.subr.mxu0 0.0
        %1025 = vmatpush1.msra.mxu0 0.0
        %1026 = vmatprep.subr.mxu0 0.0
        %1027 = vmatpush1.msra.mxu0 0.0
        %1028 = vmatprep.subr.mxu0 0.0
        %1029 = vmatpush1.msra.mxu0 0.0
        %1030 = vmatprep.subr.mxu0 0.0
        %1031 = vmatpush1.msra.mxu0 0.0
        %1032 = vmatprep.subr.mxu0 0.0
        %1033 = vmatpush1.msra.mxu0 0.0
        %1034 = vmatprep.subr.mxu0 0.0
        %1035 = vmatpush1.msra.mxu0 0.0
        %1036 = vmatprep.subr.mxu0 0.0
        %1037 = vmatpush1.msra.mxu0 0.0
        %1038 = vmatprep.subr.mxu0 0.0
        %1039 = vmatpush1.msra.mxu0 0.0
        %1040 = vmatprep.subr.mxu0 0.0
        %1041 = vmatpush1.msra.mxu0 0.0
        %1042 = vmatprep.subr.mxu0 0.0
        %1043 = vmatpush1.msra.mxu0 0.0
        %1044 = vmatprep.subr.mxu0 0.0
        %1045 = vmatpush1.msra.mxu0 0.0
        %1046 = vmatprep.subr.mxu0 0.0
        %1047 = vmatpush1.msra.mxu0 0.0
        %1048 = vmatprep.subr.mxu0 0.0
        %1049 = vmatpush1.msra.mxu0 0.0
        %1050 = vmatprep.subr.mxu0 0.0
        %1051 = vmatpush1.msra.mxu0 0.0
        %1052 = vmatprep.subr.mxu0 0.0
        %1053 = vmatpush1.msra.mxu0 0.0
        %1054 = vmatprep.subr.mxu0 0.0
        %1055 = vmatpush1.msra.mxu0 0.0
        %1056 = vmatprep.subr.mxu0 0.0
        %1057 = vmatpush1.msra.mxu0 0.0
        %1058 = vmatprep.subr.mxu0 0.0
        %1059 = vmatpush1.msra.mxu0 0.0
        %1060 = vmatprep.subr.mxu0 0.0
        %1061 = vmatpush1.msra.mxu0 0.0
        %1062 = vmatprep.subr.mxu0 0.0
        %1063 = vmatpush1.msra.mxu0 0.0
        %1064 = vmatprep.subr.mxu0 0.0
        %1065 = vmatpush1.msra.mxu0 0.0
        %1066 = vmatprep.mubr.f32.mxu0 0.0
        %1067 = vmatmul.mubr.f32.gmra.mrb[0].mxu0 %v1000
        %v1068 = vpop.f32.mrb[0].mxu0
        %v1069 = vadd.f32 0.0, %v1068
        %v1070 = vpop.f32.mrb[0].mxu0
        %1071 = vdwg.mxu0
        %v1072 = vadd.f32 %v830, %v1069
        %1073 = vrot.lane.b32.xlu0 %v352, 104
        %v1074 = vpop.permute.xlu0 %1073
        %1075 = vrot.lane.b32.xlu0 %v352, 72
        %v1076 = vpop.permute.xlu0 %1075
        %v1077 = vsel %vm358, %v1074, 0
        %v1079 = vsel %vm358, %v1076, 0
        %1081 = vmatprep.subr.mxu0 0.0
        %1082 = vmatpush1.xpose.msra.mxu0 %v1079
        %1083 = vmatprep.subr.mxu0 0.0
        %1084 = vmatpush1.xpose.msra.mxu0 0.0
        %1085 = vmatprep.subr.mxu0 0.0
        %1086 = vmatpush1.xpose.msra.mxu0 0.0
        %1087 = vmatprep.subr.mxu0 0.0
        %1088 = vmatpush1.xpose.msra.mxu0 0.0
        %1089 = vmatprep.subr.mxu0 0.0
        %1090 = vmatpush1.xpose.msra.mxu0 0.0
        %1091 = vmatprep.subr.mxu0 0.0
        %1092 = vmatpush1.xpose.msra.mxu0 0.0
        %1093 = vmatprep.subr.mxu0 0.0
        %1094 = vmatpush1.xpose.msra.mxu0 0.0
        %1095 = vmatprep.subr.mxu0 0.0
        %1096 = vmatpush1.xpose.msra.mxu0 0.0
        %1097 = vmatprep.subr.mxu0 0.0
        %1098 = vmatpush1.xpose.msra.mxu0 0.0
        %1099 = vmatprep.subr.mxu0 0.0
        %1100 = vmatpush1.xpose.msra.mxu0 0.0
        %1101 = vmatprep.subr.mxu0 0.0
        %1102 = vmatpush1.xpose.msra.mxu0 0.0
        %1103 = vmatprep.subr.mxu0 0.0
        %1104 = vmatpush1.xpose.msra.mxu0 0.0
        %1105 = vmatprep.subr.mxu0 0.0
        %1106 = vmatpush1.xpose.msra.mxu0 0.0
        %1107 = vmatprep.subr.mxu0 0.0
        %1108 = vmatpush1.xpose.msra.mxu0 0.0
        %1109 = vmatprep.subr.mxu0 0.0
        %1110 = vmatpush1.xpose.msra.mxu0 0.0
        %1111 = vmatprep.subr.mxu0 0.0
        %1112 = vmatpush1.xpose.msra.mxu0 0.0
        %1113 = vmatprep.subr.mxu0 0.0
        %1114 = vmatpush1.xpose.msra.mxu0 0.0
        %1115 = vmatprep.subr.mxu0 0.0
        %1116 = vmatpush1.xpose.msra.mxu0 0.0
        %1117 = vmatprep.subr.mxu0 0.0
        %1118 = vmatpush1.xpose.msra.mxu0 0.0
        %1119 = vmatprep.subr.mxu0 0.0
        %1120 = vmatpush1.xpose.msra.mxu0 0.0
        %1121 = vmatprep.subr.mxu0 0.0
        %1122 = vmatpush1.xpose.msra.mxu0 0.0
        %1123 = vmatprep.subr.mxu0 0.0
        %1124 = vmatpush1.xpose.msra.mxu0 0.0
        %1125 = vmatprep.subr.mxu0 0.0
        %1126 = vmatpush1.xpose.msra.mxu0 0.0
        %1127 = vmatprep.subr.mxu0 0.0
        %1128 = vmatpush1.xpose.msra.mxu0 0.0
        %1129 = vmatprep.subr.mxu0 0.0
        %1130 = vmatpush1.xpose.msra.mxu0 0.0
        %1131 = vmatprep.subr.mxu0 0.0
        %1132 = vmatpush1.xpose.msra.mxu0 0.0
        %1133 = vmatprep.subr.mxu0 0.0
        %1134 = vmatpush1.xpose.msra.mxu0 0.0
        %1135 = vmatprep.subr.mxu0 0.0
        %1136 = vmatpush1.xpose.msra.mxu0 0.0
        %1137 = vmatprep.subr.mxu0 0.0
        %1138 = vmatpush1.xpose.msra.mxu0 0.0
        %1139 = vmatprep.subr.mxu0 0.0
        %1140 = vmatpush1.xpose.msra.mxu0 0.0
        %1141 = vmatprep.subr.mxu0 0.0
        %1142 = vmatpush1.xpose.msra.mxu0 0.0
        %1143 = vmatprep.subr.mxu0 0.0
        %1144 = vmatpush1.xpose.msra.mxu0 0.0
        %1145 = vmatprep.mubr.f32.mxu0 0.0
        %1146 = vmatmul.mubr.f32.gmra.mrb[0].mxu0 %v1077
        %v1147 = vpop.f32.mrb[0].mxu0
        %v1148 = vadd.f32 0.0, %v1147
        %v1149 = vpop.f32.mrb[0].mxu0
        %1150 = vdwg.mxu0
        %v1151 = vsel %vm358, %v1148, -inf
        %1152 = vmax.xlane.f32.xlu0 %v1151
        %v1153 = vpop.xlane.xlu0 %1152
        %v1154 = vsub.f32 %v1148, %v1153
        %v1155 = vmul.f32 %v1154, 1.442695
        %v1156 = vpow.pop %v1155
        %v1157 = vsel %vm358, %v1156, 0.0
        %1158 = vadd.xlane.f32.xlu0 %v1157
        %v1159 = vpop.xlane.xlu0 %1158
        %1160 = vrot.lane.b32.xlu0 %v352, 40
        %v1161 = vpop.permute.xlu0 %1160
        %v1164 = vsel %vm358, %v1156, 0
        %1166 = vmatprep.subr.mxu0 0.0
        %1167 = vmatpush1.msra.mxu0 %v1161
        %1168 = vmatprep.subr.mxu0 0.0
        %1169 = vmatpush1.msra.mxu0 0.0
        %1170 = vmatprep.subr.mxu0 0.0
        %1171 = vmatpush1.msra.mxu0 0.0
        %1172 = vmatprep.subr.mxu0 0.0
        %1173 = vmatpush1.msra.mxu0 0.0
        %1174 = vmatprep.subr.mxu0 0.0
        %1175 = vmatpush1.msra.mxu0 0.0
        %1176 = vmatprep.subr.mxu0 0.0
        %1177 = vmatpush1.msra.mxu0 0.0
        %1178 = vmatprep.subr.mxu0 0.0
        %1179 = vmatpush1.msra.mxu0 0.0
        %1180 = vmatprep.subr.mxu0 0.0
        %1181 = vmatpush1.msra.mxu0 0.0
        %1182 = vmatprep.subr.mxu0 0.0
        %1183 = vmatpush1.msra.mxu0 0.0
        %1184 = vmatprep.subr.mxu0 0.0
        %1185 = vmatpush1.msra.mxu0 0.0
        %1186 = vmatprep.subr.mxu0 0.0
        %1187 = vmatpush1.msra.mxu0 0.0
        %1188 = vmatprep.subr.mxu0 0.0
        %1189 = vmatpush1.msra.mxu0 0.0
        %1190 = vmatprep.subr.mxu0 0.0
        %1191 = vmatpush1.msra.mxu0 0.0
        %1192 = vmatprep.subr.mxu0 0.0
        %1193 = vmatpush1.msra.mxu0 0.0
        %1194 = vmatprep.subr.mxu0 0.0
        %1195 = vmatpush1.msra.mxu0 0.0
        %1196 = vmatprep.subr.mxu0 0.0
        %1197 = vmatpush1.msra.mxu0 0.0
        %1198 = vmatprep.subr.mxu0 0.0
        %1199 = vmatpush1.msra.mxu0 0.0
        %1200 = vmatprep.subr.mxu0 0.0
        %1201 = vmatpush1.msra.mxu0 0.0
        %1202 = vmatprep.subr.mxu0 0.0
        %1203 = vmatpush1.msra.mxu0 0.0
        %1204 = vmatprep.subr.mxu0 0.0
        %1205 = vmatpush1.msra.mxu0 0.0
        %1206 = vmatprep.subr.mxu0 0.0
        %1207 = vmatpush1.msra.mxu0 0.0
        %1208 = vmatprep.subr.mxu0 0.0
        %1209 = vmatpush1.msra.mxu0 0.0
        %1210 = vmatprep.subr.mxu0 0.0
        %1211 = vmatpush1.msra.mxu0 0.0
        %1212 = vmatprep.subr.mxu0 0.0
        %1213 = vmatpush1.msra.mxu0 0.0
        %1214 = vmatprep.subr.mxu0 0.0
        %1215 = vmatpush1.msra.mxu0 0.0
        %1216 = vmatprep.subr.mxu0 0.0
        %1217 = vmatpush1.msra.mxu0 0.0
        %1218 = vmatprep.subr.mxu0 0.0
        %1219 = vmatpush1.msra.mxu0 0.0
        %1220 = vmatprep.subr.mxu0 0.0
        %1221 = vmatpush1.msra.mxu0 0.0
        %1222 = vmatprep.subr.mxu0 0.0
        %1223 = vmatpush1.msra.mxu0 0.0
        %1224 = vmatprep.subr.mxu0 0.0
        %1225 = vmatpush1.msra.mxu0 0.0
        %1226 = vmatprep.subr.mxu0 0.0
        %1227 = vmatpush1.msra.mxu0 0.0
        %1228 = vmatprep.subr.mxu0 0.0
        %1229 = vmatpush1.msra.mxu0 0.0
        %1230 = vmatprep.mubr.f32.mxu0 0.0
        %1231 = vmatmul.mubr.f32.gmra.mrb[0].mxu0 %v1164
        %v1232 = vpop.f32.mrb[0].mxu0
        %v1233 = vadd.f32 0.0, %v1232
        %v1234 = vpop.f32.mrb[0].mxu0
        %1235 = vdwg.mxu0
        %v1236 = vrcp.pop %v1159
        %v1237 = vmul.f32 %v1233, %v1236
        %v1238 = vld [vmem:[#allocation7 + $0x18] sm:$0xff]
        %v1240 = vsel %vm358, %v1237, 0
        %1242 = vmatprep.subr.mxu0 0.0
        %1243 = vmatpush1.msra.mxu0 %v1238
        %1244 = vmatprep.subr.mxu0 0.0
        %1245 = vmatpush1.msra.mxu0 0.0
        %1246 = vmatprep.subr.mxu0 0.0
        %1247 = vmatpush1.msra.mxu0 0.0
        %1248 = vmatprep.subr.mxu0 0.0
        %1249 = vmatpush1.msra.mxu0 0.0
        %1250 = vmatprep.subr.mxu0 0.0
        %1251 = vmatpush1.msra.mxu0 0.0
        %1252 = vmatprep.subr.mxu0 0.0
        %1253 = vmatpush1.msra.mxu0 0.0
        %1254 = vmatprep.subr.mxu0 0.0
        %1255 = vmatpush1.msra.mxu0 0.0
        %1256 = vmatprep.subr.mxu0 0.0
        %1257 = vmatpush1.msra.mxu0 0.0
        %1258 = vmatprep.subr.mxu0 0.0
        %1259 = vmatpush1.msra.mxu0 0.0
        %1260 = vmatprep.subr.mxu0 0.0
        %1261 = vmatpush1.msra.mxu0 0.0
        %1262 = vmatprep.subr.mxu0 0.0
        %1263 = vmatpush1.msra.mxu0 0.0
        %1264 = vmatprep.subr.mxu0 0.0
        %1265 = vmatpush1.msra.mxu0 0.0
        %1266 = vmatprep.subr.mxu0 0.0
        %1267 = vmatpush1.msra.mxu0 0.0
        %1268 = vmatprep.subr.mxu0 0.0
        %1269 = vmatpush1.msra.mxu0 0.0
        %1270 = vmatprep.subr.mxu0 0.0
        %1271 = vmatpush1.msra.mxu0 0.0
        %1272 = vmatprep.subr.mxu0 0.0
        %1273 = vmatpush1.msra.mxu0 0.0
        %1274 = vmatprep.subr.mxu0 0.0
        %1275 = vmatpush1.msra.mxu0 0.0
        %1276 = vmatprep.subr.mxu0 0.0
        %1277 = vmatpush1.msra.mxu0 0.0
        %1278 = vmatprep.subr.mxu0 0.0
        %1279 = vmatpush1.msra.mxu0 0.0
        %1280 = vmatprep.subr.mxu0 0.0
        %1281 = vmatpush1.msra.mxu0 0.0
        %1282 = vmatprep.subr.mxu0 0.0
        %1283 = vmatpush1.msra.mxu0 0.0
        %1284 = vmatprep.subr.mxu0 0.0
        %1285 = vmatpush1.msra.mxu0 0.0
        %1286 = vmatprep.subr.mxu0 0.0
        %1287 = vmatpush1.msra.mxu0 0.0
        %1288 = vmatprep.subr.mxu0 0.0
        %1289 = vmatpush1.msra.mxu0 0.0
        %1290 = vmatprep.subr.mxu0 0.0
        %1291 = vmatpush1.msra.mxu0 0.0
        %1292 = vmatprep.subr.mxu0 0.0
        %1293 = vmatpush1.msra.mxu0 0.0
        %1294 = vmatprep.subr.mxu0 0.0
        %1295 = vmatpush1.msra.mxu0 0.0
        %1296 = vmatprep.subr.mxu0 0.0
        %1297 = vmatpush1.msra.mxu0 0.0
        %1298 = vmatprep.subr.mxu0 0.0
        %1299 = vmatpush1.msra.mxu0 0.0
        %1300 = vmatprep.subr.mxu0 0.0
        %1301 = vmatpush1.msra.mxu0 0.0
        %1302 = vmatprep.subr.mxu0 0.0
        %1303 = vmatpush1.msra.mxu0 0.0
        %1304 = vmatprep.subr.mxu0 0.0
        %1305 = vmatpush1.msra.mxu0 0.0
        %1306 = vmatprep.mubr.f32.mxu0 0.0
        %1307 = vmatmul.mubr.f32.gmra.mrb[0].mxu0 %v1240
        %v1308 = vpop.f32.mrb[0].mxu0
        %v1309 = vadd.f32 0.0, %v1308
        %v1310 = vpop.f32.mrb[0].mxu0
        %1311 = vdwg.mxu0
        %v1312 = vadd.f32 %v1072, %v1309
        %v1313 = vld [vmem:[%s4] sm:$0x1]
        %v1315 = vlaneseq
        %v1316 = vshrl.u32 %v1315, 7
        %v1317 = vsub.s32 0, %v1316
        %v1318 = vrot.slane %v1313, %v1317
        %v1320 = vadd.f32 %v1312, %v1318
        %1321 = vst.msk [vmem:[%s268] sm:$0xff] %vm281, %v1320
        %s1322 = sand.u32 %s141, 1
        %s1323 = scalar_lea.sflag [#allocation4], %s1322
        %s1324 = sand.u32 %s141, 1
        %s1325 = smul.addr %s1324, 8
        %s1326 = scalar_lea.vmem [#allocation8], %s1325
        // Predicated region
        $region53: #{tpu_custom_call.1} parent=39 // pred_check
          %p1327 = pneg %p151
        $region54: #{tpu_custom_call.1} parent=39 // pred_check_branch
          %1329 = sbr.rel (%p1327) target = $region56
        $region55: #{tpu_custom_call.1} parent=39 // pred_region
          %s1331 = ssub.s32 128, 128
          %1332 = vsyncadd %s1323, %s1331
          %s1333 = smul.addr %s23, 128
          %s1334 = scalar_lea.hbm %s5, %s1333
          %s1336 = sshll.u32 %s1326, 4
          %s1337 = int_to_ptr.vmem [resolvable:$true] %s1336
          %1339 = dma.vmem_to_hbm [thread:$0]  %s1337, 128, %s1334, %s1323
        $region56: #{tpu_custom_call.1} parent=39 // pred_fallthru
          _
      $region40: #{tpu_custom_call.1} parent=5 // pred_fallthru
        _
      %p1340 = scmp.le.s32.totalorder 2, %s18
      // Predicated region
      $region57: #{tpu_custom_call.1} parent=5 // pred_check
        %p1341 = pneg %p1340
      $region58: #{tpu_custom_call.1} parent=5 // pred_check_branch
        %1343 = sbr.rel (%p1341) target = $region60
      $region59: #{tpu_custom_call.1} parent=5 // pred_region
        %s1344 = ssub.s32 %s18, 2
        // Predicated region
        $region61: #{tpu_custom_call.1} parent=59 // pred_check
          %p1345 = pneg %p157
        $region62: #{tpu_custom_call.1} parent=59 // pred_check_branch
          %1347 = sbr.rel (%p1345) target = $region64
        $region63: #{tpu_custom_call.1} parent=59 // pred_region
          %s1348 = sand.u32 %s142, 1
          %s1349 = scalar_lea.sflag [#allocation4], %s1348
          %s1350 = sand.u32 %s142, 1
          %s1351 = smul.addr %s1350, 8
          %s1352 = scalar_lea.vmem [#allocation8], %s1351
          %1353 = dma.done %s1349, 128
        $region64: #{tpu_custom_call.1} parent=59 // pred_fallthru
          _
      $region60: #{tpu_custom_call.1} parent=5 // pred_fallthru
        _
    $region6: #{tpu_custom_call.1} parent=1 // loop_footer
      %s22 = sadd.s32 1, %s18
    $region7: #{tpu_custom_call.1} parent=1 // loop_footer_branch
      %17 = sbr.rel target = $region3
    $region8: #{tpu_custom_call.1} parent=1 // loop_exit
      _
    %1354 = vsyncpa [#allocation3], 1
    %s1355 = scalar_lea.sflag [#allocation3], 1
    %1356 = vsyncpa %s1355, 1
    %1357 = vsyncpa [#allocation6], 1
    %1358 = vsyncpa [#allocation4], 1
    %s1359 = scalar_lea.sflag [#allocation4], 1
    %1360 = vsyncpa %s1359, 1

</llo_original>
